<compile_context>
chip_gen: v6e
topology: v6e:2x2x1
jax: 0.10.0
libtpu: 0.0.40
codegen_flags: <defaults>
</compile_context>

<pallas_src>
import numpy as np
import jax
import jax.numpy as jnp
from jax.experimental import pallas as pl
from jax.experimental.pallas import tpu as pltpu


# ---------------------------------------------------------------------------
# Host-side helpers (bilinear resize as a matrix, align_corners=True)
# ---------------------------------------------------------------------------
def _bilinear_matrix(out_size: int, in_size: int) -> np.ndarray:
    """(out_size, in_size) matrix reproducing 1-D linear interpolation with
    PyTorch's align_corners=True semantics: out = R @ in."""
    R = np.zeros((out_size, in_size), dtype=np.float32)
    if in_size == 1:
        R[:, 0] = 1.0
        return R
    if out_size == 1:
        # align_corners=True with a single output sample maps to source coord 0
        R[0, 0] = 1.0
        return R
    scale = (in_size - 1) / (out_size - 1)
    for o in range(out_size):
        src = o * scale
        i0 = min(int(np.floor(src)), in_size - 1)
        i1 = min(i0 + 1, in_size - 1)
        w1 = src - i0
        w0 = 1.0 - w1
        R[o, i0] += w0
        R[o, i1] += w1
    return R


def _resize_matrix_T(out_hw, in_hw) -> np.ndarray:
    """Transposed full 2-D bilinear resize matrix: (Hin*Win, Hout*Wout)."""
    ry = _bilinear_matrix(out_hw[0], in_hw[0])
    rx = _bilinear_matrix(out_hw[1], in_hw[1])
    return np.ascontiguousarray(np.kron(ry, rx).T.astype(np.float32))


def _matmul_precision(dtype):
    # fp32 contraction for exact f32 results; hardware default for bf16.
    return jax.lax.Precision.HIGHEST if dtype == jnp.float32 else None


# ---------------------------------------------------------------------------
# Pallas kernels: fused 1x1 conv + bilinear resize, NCHW-native, 2 MXU matmuls
# ---------------------------------------------------------------------------
def _conv_first_kernel(x_ref, w_ref, rT_ref, o_ref):
    # x_ref : (1, Cin, HWin)   one batch element, NCHW-flat (== X^T)
    # w_ref : (tc, Cin)        tile of conv weight in PyTorch (Cout, Cin) layout
    # rT_ref: (HWin, HWout)    transposed bilinear resize matrix
    # o_ref : (1, tc, HWout)   NCHW-flat output tile (lane dim = HWout)
    prec = _matmul_precision(x_ref.dtype)
    y = jnp.dot(w_ref[...], x_ref[0], precision=prec,
                preferred_element_type=jnp.float32)            # (tc, HWin)
    z = jnp.dot(y.astype(rT_ref.dtype), rT_ref[...], precision=prec,
                preferred_element_type=jnp.float32)            # (tc, HWout)
    o_ref[0] = z.astype(o_ref.dtype)


def _resize_first_kernel(x_ref, w_ref, rT_ref, o_ref):
    # Same refs; resize applied before the channel projection (cheaper when
    # the spatial size shrinks and Cout > Cin).
    prec = _matmul_precision(x_ref.dtype)
    u = jnp.dot(x_ref[0], rT_ref[...], precision=prec,
                preferred_element_type=jnp.float32)            # (Cin, HWout)
    z = jnp.dot(w_ref[...], u.astype(w_ref.dtype), precision=prec,
                preferred_element_type=jnp.float32)            # (Cout, HWout)
    o_ref[0] = z.astype(o_ref.dtype)


def conv1x1_bilinear_resize_nchw(x_nchw, w_oc_ic, out_hw,
                                 compute_dtype=jnp.float32):
    """x_nchw: (N, Cin, Hin, Win); w_oc_ic: (Cout, Cin); out_hw: (Hout, Wout).
    Returns (N, Cout, Hout, Wout) in x_nchw.dtype."""
    n, cin, hin, win = x_nchw.shape
    cout = w_oc_ic.shape[0]
    hout, wout = out_hw
    hwin, hwout = hin * win, hout * wout

    rT = jnp.asarray(_resize_matrix_T((hout, wout), (hin, win)))  # (HWin, HWout)
    x_flat = x_nchw.reshape(n, cin, hwin)   # metadata-only reshape in XLA

    # Per-level matmul order by FLOP count (both orders are two 2-D matmuls).
    flops_conv_first = cout * hwin * (cin + hwout)
    flops_resize_first = cin * hwout * (hwin + cout)
    conv_first = flops_conv_first <= flops_resize_first
    kernel = _conv_first_kernel if conv_first else _resize_first_kernel

    # Second parallel grid axis over Cout tiles (helps v7x's 2 TCs); only for
    # the conv-first order (resize-first would recompute the resize per tile).
    tc = 128 if (conv_first and cout % 128 == 0) else cout
    n_c = cout // tc

    xk = x_flat.astype(compute_dtype)
    wk = w_oc_ic.astype(compute_dtype)
    rk = rT.astype(compute_dtype)

    out_flat = pl.pallas_call(
        kernel,
        out_shape=jax.ShapeDtypeStruct((n, cout, hwout), x_nchw.dtype),
        grid=(n, n_c),
        in_specs=[
            pl.BlockSpec((1, cin, hwin), lambda b, c: (b, 0, 0)),
            pl.BlockSpec((tc, cin), lambda b, c: (c, 0)),
            pl.BlockSpec((hwin, hwout), lambda b, c: (0, 0)),
        ],
        out_specs=pl.BlockSpec((1, tc, hwout), lambda b, c: (b, c, 0)),
        compiler_params=pltpu.CompilerParams(
            dimension_semantics=("parallel", "parallel"),
            vmem_limit_bytes=48 * 1024 * 1024),
    )(xk, wk, rk)

    return out_flat.reshape(n, cout, hout, wout)   # metadata-only reshape


# ---------------------------------------------------------------------------
# Module wrapper (mirrors trans_QKV)
# ---------------------------------------------------------------------------
class TransQKVPallas:
    def __init__(self, in_channels=(1024, 512, 256, 128, 64), out_channels=256,
                 key=jax.random.PRNGKey(42), compute_dtype=jnp.float32):
        self.in_channels = tuple(in_channels)
        self.out_channels = out_channels
        self.compute_dtype = compute_dtype
        keys = jax.random.split(key, len(in_channels))
        # Deterministic synthetic 1x1-conv weights, PyTorch layout (Cout, Cin).
        self.weights = [
            (jax.random.normal(k, (out_channels, cin), jnp.float32)
             / np.sqrt(cin)).astype(jnp.float32)
            for k, cin in zip(keys, self.in_channels)
        ]

    def __call__(self, edge_feat, x_b_size):
        """edge_feat: list of NCHW arrays; x_b_size: list of (H, W) tuples.
        Returns list of NCHW arrays (N, out_channels, *x_b_size[len-1-i])."""
        n_levels = len(x_b_size)
        outs = []
        for i in range(n_levels):
            outs.append(conv1x1_bilinear_resize_nchw(
                edge_feat[i], self.weights[i],
                x_b_size[n_levels - 1 - i],
                compute_dtype=self.compute_dtype))
        return outs


# ---------------------------------------------------------------------------
# float64 numpy reference (independent separable-resize path)
# ---------------------------------------------------------------------------
def _reference_np(edge_feat, weights, x_b_size):
    n_levels = len(x_b_size)
    outs = []
    for i in range(n_levels):
        x = np.asarray(edge_feat[i], dtype=np.float64)          # (N, Cin, H, W)
        w = np.asarray(weights[i], dtype=np.float64)            # (Cout, Cin)
        y = np.einsum('oc,nchw->nohw', w, x)                    # 1x1 conv
        hout, wout = x_b_size[n_levels - 1 - i]
        ry = _bilinear_matrix(hout, y.shape[2]).astype(np.float64)
        rx = _bilinear_matrix(wout, y.shape[3]).astype(np.float64)
        z = np.einsum('yh,nchw,xw->ncyx', ry, y, rx)            # separable resize
        outs.append(z)
    return outs


if __name__ == "__main__":
    # Small shapes consistent with the module (5 pyramid levels, 1x1 convs).
    batch = 2
    in_channels = [64, 48, 32, 24, 16]
    out_channels = 32
    spatial = [(2, 2), (4, 4), (4, 4), (8, 8), (8, 8)]        # edge_feat[i] H, W
    x_b_size = [(16, 16), (8, 8), (8, 8), (4, 4), (4, 4)]     # level i -> x_b_size[len-1-i]

    key = jax.random.PRNGKey(0)
    keys = jax.random.split(key, len(in_channels))
    edge_feat = [
        jax.random.normal(k, (batch, c, h, w), jnp.float32)
        for k, c, (h, w) in zip(keys, in_channels, spatial)
    ]

    model = TransQKVPallas(in_channels=in_channels, out_channels=out_channels)

    # --- f32 path (Precision.HIGHEST), tight tolerance vs float64 reference ---
    outs = model(edge_feat, x_b_size)
    outs = [jax.block_until_ready(o) for o in outs]

    for i, o in enumerate(outs):
        expect = (batch, out_channels) + tuple(x_b_size[len(x_b_size) - 1 - i])
        assert o.shape == expect, (o.shape, expect)

    refs = _reference_np(edge_feat, model.weights, x_b_size)
    for o, r in zip(outs, refs):
        np.testing.assert_allclose(np.asarray(o, dtype=np.float64), r,
                                   rtol=1e-4, atol=1e-5)

    # --- bf16 MXU fast path (perf option, esp. v6e/v7x), looser tolerance ----
    model.compute_dtype = jnp.bfloat16
    outs_bf16 = model(edge_feat, x_b_size)
    outs_bf16 = [jax.block_until_ready(o) for o in outs_bf16]
    for o, r in zip(outs_bf16, refs):
        np.testing.assert_allclose(np.asarray(o, dtype=np.float64), r,
                                   rtol=5e-2, atol=5e-2)

    print("KERNEL_OK")
</pallas_src>

<mosaic_0001>
module attributes {stable_mosaic.version = 11 : i64} {
  func.func @_conv_first_kernel(%arg0: i32, %arg1: i32, %arg2: memref<1x64x4xf32, #tpu.memory_space<vmem>>, %arg3: memref<32x64xf32, #tpu.memory_space<vmem>>, %arg4: memref<4x16xf32, #tpu.memory_space<vmem>>, %arg5: memref<1x32x16xf32, #tpu.memory_space<vmem>>) attributes {dimension_semantics = [#tpu.dimension_semantics<parallel>, #tpu.dimension_semantics<parallel>], iteration_bounds = array<i64: 2, 1>, scalar_prefetch = 0 : i64, scratch_operands = 0 : i64, tpu.core_type = #tpu.core_type<tc>, window_params = [{transform_indices = @transform_0, window_bounds = array<i64: 1, 64, 4>}, {transform_indices = @transform_1, window_bounds = array<i64: 32, 64>}, {pipeline_mode = #tpu.pipeline_mode<synchronous>, transform_indices = @transform_2, window_bounds = array<i64: 4, 16>}, {transform_indices = @transform_3, window_bounds = array<i64: 1, 32, 16>}]} {
    %c0 = arith.constant 0 : index
    %c0_0 = arith.constant 0 : index
    %0 = vector.load %arg3[%c0, %c0_0] : memref<32x64xf32, #tpu.memory_space<vmem>>, vector<32x64xf32>
    %c0_1 = arith.constant 0 : index
    %c0_2 = arith.constant 0 : index
    %c0_3 = arith.constant 0 : index
    %1 = vector.load %arg2[%c0_1, %c0_2, %c0_3] : memref<1x64x4xf32, #tpu.memory_space<vmem>>, vector<1x64x4xf32>
    %2 = vector.shape_cast %1 : vector<1x64x4xf32> to vector<64x4xf32>
    %cst = arith.constant dense<0.000000e+00> : vector<32x4xf32>
    %3 = tpu.matmul %0, %2, %cst {dimension_numbers = #tpu.dot_dimension_numbers<[1], [0], [0], [1], [0, 0, 1, 1], [], []>, precision = #tpu.contract_precision<fp32>} : vector<32x64xf32>, vector<64x4xf32>, vector<32x4xf32> -> vector<32x4xf32>
    %c0_4 = arith.constant 0 : index
    %c0_5 = arith.constant 0 : index
    %4 = vector.load %arg4[%c0_4, %c0_5] : memref<4x16xf32, #tpu.memory_space<vmem>>, vector<4x16xf32>
    %cst_6 = arith.constant dense<0.000000e+00> : vector<32x16xf32>
    %5 = tpu.matmul %3, %4, %cst_6 {dimension_numbers = #tpu.dot_dimension_numbers<[1], [0], [0], [1], [0, 0, 1, 1], [], []>, precision = #tpu.contract_precision<fp32>} : vector<32x4xf32>, vector<4x16xf32>, vector<32x16xf32> -> vector<32x16xf32>
    %c0_7 = arith.constant 0 : index
    %c0_8 = arith.constant 0 : index
    %c0_9 = arith.constant 0 : index
    %6 = vector.load %arg5[%c0_7, %c0_8, %c0_9] : memref<1x32x16xf32, #tpu.memory_space<vmem>>, vector<1x32x16xf32>
    %7 = vector.shape_cast %6 : vector<1x32x16xf32> to vector<32x16xf32>
    %8 = vector.shape_cast %5 : vector<32x16xf32> to vector<1x32x16xf32>
    tpu.vector_store %arg5[%c0_7, %c0_8, %c0_9], %8 {strides = array<i32>} : memref<1x32x16xf32, #tpu.memory_space<vmem>>, vector<1x32x16xf32>,
    return
  }
  func.func @transform_0(%arg0: i32, %arg1: i32) -> (i32, i32, i32) {
    %c0_i32 = arith.constant 0 : i32
    %c0_i32_0 = arith.constant 0 : i32
    %c0_i32_1 = arith.constant 0 : i32
    return %arg0, %c0_i32, %c0_i32_0 : i32, i32, i32
  }
  func.func @transform_1(%arg0: i32, %arg1: i32) -> (i32, i32) {
    %c0_i32 = arith.constant 0 : i32
    %c0_i32_0 = arith.constant 0 : i32
    return %arg1, %c0_i32 : i32, i32
  }
  func.func @transform_2(%arg0: i32, %arg1: i32) -> (i32, i32) {
    %c0_i32 = arith.constant 0 : i32
    %c0_i32_0 = arith.constant 0 : i32
    %c0_i32_1 = arith.constant 0 : i32
    return %c0_i32, %c0_i32_0 : i32, i32
  }
  func.func @transform_3(%arg0: i32, %arg1: i32) -> (i32, i32, i32) {
    %c0_i32 = arith.constant 0 : i32
    %c0_i32_0 = arith.constant 0 : i32
    return %arg0, %arg1, %c0_i32 : i32, i32, i32
  }
}

</mosaic_0001>

<llo_original>
// kernel: tpu_custom_call.1
$region0: #{tpu_custom_call.1}
  #allocation0 [shape = 'u32[]', space=smem, size = 0x4, offset = 0x4, fixed_abs, tag = 'smem constant byte address 0x4 - core index']
  #allocation1 [shape = 'u32[144,128]{1,0:T(1,128)}', space=vmem, size = 0x12000, scoped, tag = 'internal scratch']
  %s0 = inlined_call_operand.vmem [shape: f32[2,64,4], index: 0, kind: input, shape index: {}]
  %s1 = inlined_call_operand.vmem [shape: f32[32,64], index: 1, kind: input, shape index: {}]
  %s2 = inlined_call_operand.vmem [shape: f32[4,16], index: 2, kind: input, shape index: {}]
  %s3 = inlined_call_operand.vmem [shape: f32[2,32,16], index: 3, kind: output, shape index: {}]
  %s4 = sld [smem:[#allocation0]]
  $region45: #{tpu_custom_call.1} parent=0
    _
  %s6 = ssub.s32 1, %s4
  %s7 = scalar_select 0, %s6, %s4
  loop: start=0, step=1, limit=4
  $region2: #{tpu_custom_call.1} parent=0 // loop_pre_header
    _
  $region3: #{tpu_custom_call.1} parent=0 // loop_header
    %s9 = sphi 0, %s13
    %p10 = scmp.ge.s32.totalorder %s9, 4
    %s16 = sphi 0, %s28
    %s17 = sphi 0, %s24
    %s18 = sphi 0, %s16
    %s19 = sphi 0, %s17
    %s20 = sphi 0, %s18
    %s21 = sphi 0, %s19
    %s31 = sphi 0, %s33
    %s34 = sphi 0, %s31
    %s35 = sphi 0, %s34
    %s51 = sphi 0, %s35
    %s57 = sphi 0, %s59
    %s60 = sphi 0, %s57
    %s61 = sphi 0, %s60
    %s77 = sphi 0, %s61
    %s81 = sphi 0, %s81
    %s83 = sphi 0, %s81
    %s84 = sphi 0, %s83
    %s98 = sphi 0, %s84
    %s106 = sphi 0, %s108
    %s109 = sphi 0, %s106
    %s110 = sphi 0, %s109
    %s126 = sphi 0, %s110
  $region4: #{tpu_custom_call.1} parent=0 // loop_header_branch
    %12 = sbr.rel (%p10) target = $region8
  $region5: #{tpu_custom_call.1} parent=0 // loop_body
    %s14 = ssub.s32 %s9, 1
    %s15 = ssub.s32 %s9, 2
    %s22 = sadd.s32 1, %s17
    %p23 = scmp.ge.s32.totalorder %s22, 1
    %s24 = scalar_select %p23, 0, %s22
    %s25 = sadd.s32 1, %s16
    %s26 = scalar_select %p23, %s25, %s16
    %p27 = scmp.ge.s32.totalorder %s26, 2
    %s28 = scalar_select %p27, 0, %s26
    %s29 = ssub.s32 %s16, %s28
    %p30 = scmp.eq.s32.totalorder %s29, 0
    %s32 = sadd.s32 %s31, 1
    %s33 = scalar_select %p30, %s31, %s32
    %p36 = pneg %p30
    %p37 = scmp.eq.s32.totalorder %s9, 1
    %p38 = por %p36, %p37
    %p39 = scmp.ne.s32.totalorder %s31, %s34
    %p40 = scmp.eq.s32.totalorder %s9, 0
    %p41 = por %p39, %p40
    %p42 = scmp.ne.s32.totalorder %s31, %s34
    %p43 = scmp.eq.s32.totalorder %s14, 1
    %p44 = por %p42, %p43
    %p45 = scmp.ne.s32.totalorder %s34, %s35
    %p46 = scmp.eq.s32.totalorder %s14, 0
    %p47 = por %p45, %p46
    %p48 = scmp.ne.s32.totalorder %s34, %s35
    %p49 = scmp.eq.s32.totalorder %s15, 1
    %p50 = por %p48, %p49
    %p52 = scmp.ne.s32.totalorder %s35, %s51
    %p53 = scmp.eq.s32.totalorder %s15, 0
    %p54 = por %p52, %p53
    %s55 = ssub.s32 %s17, %s24
    %p56 = scmp.eq.s32.totalorder %s55, 0
    %s58 = sadd.s32 %s57, 1
    %s59 = scalar_select %p56, %s57, %s58
    %p62 = pneg %p56
    %p63 = scmp.eq.s32.totalorder %s9, 1
    %p64 = por %p62, %p63
    %p65 = scmp.ne.s32.totalorder %s57, %s60
    %p66 = scmp.eq.s32.totalorder %s9, 0
    %p67 = por %p65, %p66
    %p68 = scmp.ne.s32.totalorder %s57, %s60
    %p69 = scmp.eq.s32.totalorder %s14, 1
    %p70 = por %p68, %p69
    %p71 = scmp.ne.s32.totalorder %s60, %s61
    %p72 = scmp.eq.s32.totalorder %s14, 0
    %p73 = por %p71, %p72
    %p74 = scmp.ne.s32.totalorder %s60, %s61
    %p75 = scmp.eq.s32.totalorder %s15, 1
    %p76 = por %p74, %p75
    %p78 = scmp.ne.s32.totalorder %s61, %s77
    %p79 = scmp.eq.s32.totalorder %s15, 0
    %p80 = por %p78, %p79
    %s82 = sadd.s32 %s81, 1
    %p85 = scmp.eq.s32.totalorder %s9, 1
    %p86 = scmp.ne.s32.totalorder %s81, %s83
    %p87 = scmp.eq.s32.totalorder %s9, 0
    %p88 = por %p86, %p87
    %p89 = scmp.ne.s32.totalorder %s81, %s83
    %p90 = scmp.eq.s32.totalorder %s14, 1
    %p91 = por %p89, %p90
    %p92 = scmp.ne.s32.totalorder %s83, %s84
    %p93 = scmp.eq.s32.totalorder %s14, 0
    %p94 = por %p92, %p93
    %p95 = scmp.ne.s32.totalorder %s83, %s84
    %p96 = scmp.eq.s32.totalorder %s15, 1
    %p97 = por %p95, %p96
    %p99 = scmp.ne.s32.totalorder %s84, %s98
    %p100 = scmp.eq.s32.totalorder %s15, 0
    %p101 = por %p99, %p100
    %s102 = ssub.s32 %s16, %s28
    %s103 = ssub.s32 %s17, %s24
    %s104 = sor.u32 %s102, %s103
    %p105 = scmp.eq.s32.totalorder %s104, 0
    %s107 = sadd.s32 %s106, 1
    %s108 = scalar_select %p105, %s106, %s107
    %p111 = pneg %p105
    %p112 = scmp.eq.s32.totalorder %s9, 1
    %p113 = por %p111, %p112
    %p114 = scmp.ne.s32.totalorder %s106, %s109
    %p115 = scmp.eq.s32.totalorder %s9, 0
    %p116 = por %p114, %p115
    %p117 = scmp.ne.s32.totalorder %s106, %s109
    %p118 = scmp.eq.s32.totalorder %s14, 1
    %p119 = por %p117, %p118
    %p120 = scmp.ne.s32.totalorder %s109, %s110
    %p121 = scmp.eq.s32.totalorder %s14, 0
    %p122 = por %p120, %p121
    %p123 = scmp.ne.s32.totalorder %s109, %s110
    %p124 = scmp.eq.s32.totalorder %s15, 1
    %p125 = por %p123, %p124
    %p127 = scmp.ne.s32.totalorder %s110, %s126
    %p128 = scmp.eq.s32.totalorder %s15, 0
    %p129 = por %p127, %p128
    %p130 = scmp.le.s32.totalorder 1, %s9
    %p131 = scmp.lt.s32.totalorder %s9, 3
    %p132 = pnand %p130, %p131
    %p133 = pneg %p132
    // Predicated region
    $region9: #{tpu_custom_call.1} parent=5 // pred_check
      _
    $region10: #{tpu_custom_call.1} parent=5 // pred_check_branch
      %135 = sbr.rel (%p132) target = $region12
    $region11: #{tpu_custom_call.1} parent=5 // pred_region
      %s136 = ssub.s32 %s9, 1
      // Predicated region
      $region13: #{tpu_custom_call.1} parent=11 // pred_check
        %p137 = pneg %p73
      $region14: #{tpu_custom_call.1} parent=11 // pred_check_branch
        %139 = sbr.rel (%p137) target = $region16
      $region15: #{tpu_custom_call.1} parent=11 // pred_region
        %s140 = smul.u32 4, %s19
        %p141 = scmp.lt.s32.totalorder %s140, 3
        %s142 = scalar_select %p141, %s140, 3
        %s143 = smul.addr %s142, 8
        %s144 = scalar_lea.vmem %s1, %s143
        %s145 = smul.u32 4, %s19
      $region16: #{tpu_custom_call.1} parent=11 // pred_fallthru
        _
      // Predicated region
      $region17: #{tpu_custom_call.1} parent=11 // pred_check
        %p146 = pneg %p94
      $region18: #{tpu_custom_call.1} parent=11 // pred_check_branch
        %148 = sbr.rel (%p146) target = $region20
      $region19: #{tpu_custom_call.1} parent=11 // pred_region
        _
      $region20: #{tpu_custom_call.1} parent=11 // pred_fallthru
        _
    $region12: #{tpu_custom_call.1} parent=5 // pred_fallthru
      _
    %p149 = scmp.lt.s32.totalorder %s9, 2
    // Predicated region
    $region21: #{tpu_custom_call.1} parent=5 // pred_check
      %p150 = pneg %p149
    $region22: #{tpu_custom_call.1} parent=5 // pred_check_branch
      %152 = sbr.rel (%p150) target = $region24
    $region23: #{tpu_custom_call.1} parent=5 // pred_region
      // Predicated region
      $region25: #{tpu_custom_call.1} parent=23 // pred_check
        %p153 = pneg %p41
      $region26: #{tpu_custom_call.1} parent=23 // pred_check_branch
        %155 = sbr.rel (%p153) target = $region28
      $region27: #{tpu_custom_call.1} parent=23 // pred_region
        %p156 = scmp.lt.s32.totalorder %s16, 1
        %s157 = scalar_select %p156, %s16, 1
        %s158 = smul.addr %s157, 8
        %s159 = smul.addr %s158, 8
        %s160 = scalar_lea.vmem %s0, %s159
      $region28: #{tpu_custom_call.1} parent=23 // pred_fallthru
        _
    $region24: #{tpu_custom_call.1} parent=5 // pred_fallthru
      _
    %p161 = scmp.le.s32.totalorder 1, %s9
    %p162 = scmp.lt.s32.totalorder %s9, 3
    %p163 = pnand %p161, %p162
    %p164 = pneg %p163
    // Predicated region
    $region29: #{tpu_custom_call.1} parent=5 // pred_check
      _
    $region30: #{tpu_custom_call.1} parent=5 // pred_check_branch
      %166 = sbr.rel (%p163) target = $region32
    $region31: #{tpu_custom_call.1} parent=5 // pred_region
      %s167 = ssub.s32 %s9, 1
      %p168 = scmp.lt.s32.totalorder %s18, 1
      %s169 = scalar_select %p168, %s18, 1
      %s170 = smul.addr %s169, 8
      %s171 = smul.addr %s170, 8
      %s172 = scalar_lea.vmem %s0, %s171
      %p173 = pneg %p47
      %p174 = pneg %p44
      %s175 = smul.u32 4, %s19
      %p176 = scmp.lt.s32.totalorder %s175, 3
      %s177 = scalar_select %p176, %s175, 3
      %s178 = smul.addr %s177, 8
      %s179 = scalar_lea.vmem %s1, %s178
      %p180 = pneg %p73
      %p181 = pneg %p70
      %p182 = pneg %p94
      %p183 = pneg %p91
      %p184 = pneg %p122
      %p185 = pneg %p119
      %s186 = smul.u32 4, %s19
      %p187 = scmp.lt.s32.totalorder %s18, 1
      %s188 = scalar_select %p187, %s18, 1
      %p189 = scmp.lt.s32.totalorder %s186, 3
      %s190 = scalar_select %p189, %s186, 3
      %s191 = smul.addr %s188, 4
      %s192 = sadd.s32 %s190, %s191
      %s193 = smul.addr %s192, 8
      %s194 = scalar_lea.vmem %s3, %s193
      %p195 = scmp.lt.s32.totalorder %s18, 1
      %s196 = scalar_select %p195, %s18, 1
      %s197 = smul.addr %s196, 8
      %s198 = smul.addr %s197, 8
      %s199 = scalar_lea.vmem %s0, %s198
      %s200 = smul.u32 4, %s19
      %p201 = scmp.lt.s32.totalorder %s200, 3
      %s202 = scalar_select %p201, %s200, 3
      %s203 = smul.addr %s202, 8
      %s204 = scalar_lea.vmem %s1, %s203
      %s205 = smul.u32 4, %s19
      %s206 = smul.u32 4, %s19
      %p207 = scmp.lt.s32.totalorder %s18, 1
      %s208 = scalar_select %p207, %s18, 1
      %p209 = scmp.lt.s32.totalorder %s206, 3
      %s210 = scalar_select %p209, %s206, 3
      %s211 = smul.addr %s208, 4
      %s212 = sadd.s32 %s210, %s211
      %s213 = smul.addr %s212, 8
      %s214 = scalar_lea.vmem %s3, %s213
      %s215 = smul.u32 4, %s19
      %v216 = vld [vmem:[%s204] sm:$0xff]
      %v217 = vld [vmem:[%s204 + $0x8] sm:$0xff]
      %v218 = vld [vmem:[%s204 + $0x10] sm:$0xff]
      %v219 = vld [vmem:[%s204 + $0x18] sm:$0xff]
      %v220 = vld [vmem:[%s199] sm:$0xff]
      %v221 = vld [vmem:[%s199 + $0x8] sm:$0xff]
      %v222 = vld [vmem:[%s199 + $0x10] sm:$0xff]
      %v223 = vld [vmem:[%s199 + $0x18] sm:$0xff]
      %v224 = vld [vmem:[%s199 + $0x20] sm:$0xff]
      %v225 = vld [vmem:[%s199 + $0x28] sm:$0xff]
      %v226 = vld [vmem:[%s199 + $0x30] sm:$0xff]
      %v227 = vld [vmem:[%s199 + $0x38] sm:$0xff]
      %vm228 = vcmask 523264
      %v230 = vsel %vm228, %v216, 0
      %v233 = vsel %vm228, %v217, 0
      %v236 = vsel %vm228, %v218, 0
      %v239 = vsel %vm228, %v219, 0
      %241 = vmatprep.subr.mxu0 0.0
      %242 = vmatpush1.msra.mxu0 0.0
      %243 = vmatprep.subr.mxu0 0.0
      %244 = vmatpush1.msra.mxu0 0.0
      %245 = vmatprep.subr.mxu0 0.0
      %246 = vmatpush1.msra.mxu0 0.0
      %247 = vmatprep.subr.mxu0 0.0
      %248 = vmatpush1.msra.mxu0 0.0
      %249 = vmatprep.subr.mxu0 0.0
      %250 = vmatpush1.msra.mxu0 0.0
      %251 = vmatprep.subr.mxu0 0.0
      %252 = vmatpush1.msra.mxu0 0.0
      %253 = vmatprep.subr.mxu0 0.0
      %254 = vmatpush1.msra.mxu0 0.0
      %255 = vmatprep.subr.mxu0 0.0
      %256 = vmatpush1.msra.mxu0 0.0
      %257 = vmatprep.subr.mxu0 0.0
      %v258 = vand.u32 %v227, 4294901760
      %259 = vmatpush1.msra.mxu0 %v258
      %260 = vmatprep.subr.mxu0 0.0
      %v261 = vand.u32 %v226, 4294901760
      %262 = vmatpush1.msra.mxu0 %v261
      %263 = vmatprep.subr.mxu0 0.0
      %v264 = vand.u32 %v225, 4294901760
      %265 = vmatpush1.msra.mxu0 %v264
      %266 = vmatprep.subr.mxu0 0.0
      %v267 = vand.u32 %v224, 4294901760
      %268 = vmatpush1.msra.mxu0 %v267
      %269 = vmatprep.subr.mxu0 0.0
      %v270 = vand.u32 %v223, 4294901760
      %271 = vmatpush1.msra.mxu0 %v270
      %272 = vmatprep.subr.mxu0 0.0
      %v273 = vand.u32 %v222, 4294901760
      %274 = vmatpush1.msra.mxu0 %v273
      %275 = vmatprep.subr.mxu0 0.0
      %v276 = vand.u32 %v221, 4294901760
      %277 = vmatpush1.msra.mxu0 %v276
      %278 = vmatprep.subr.mxu0 0.0
      %v279 = vand.u32 %v220, 4294901760
      %280 = vmatpush1.msra.mxu0 %v279
      %281 = vmatprep.subr.mxu0 0.0
      %282 = vmatpush2.msra.mxu0 0.0
      %283 = vmatprep.subr.mxu0 0.0
      %284 = vmatpush2.msra.mxu0 0.0
      %285 = vmatprep.subr.mxu0 0.0
      %286 = vmatpush2.msra.mxu0 0.0
      %287 = vmatprep.subr.mxu0 0.0
      %288 = vmatpush2.msra.mxu0 0.0
      %289 = vmatprep.subr.mxu0 0.0
      %290 = vmatpush2.msra.mxu0 0.0
      %291 = vmatprep.subr.mxu0 0.0
      %292 = vmatpush2.msra.mxu0 0.0
      %293 = vmatprep.subr.mxu0 0.0
      %294 = vmatpush2.msra.mxu0 0.0
      %295 = vmatprep.subr.mxu0 0.0
      %296 = vmatpush2.msra.mxu0 0.0
      %297 = vmatprep.subr.mxu0 0.0
      %298 = vmatpush2.msra.mxu0 0.0
      %299 = vmatprep.subr.mxu0 0.0
      %300 = vmatpush2.msra.mxu0 0.0
      %301 = vmatprep.subr.mxu0 0.0
      %302 = vmatpush2.msra.mxu0 0.0
      %303 = vmatprep.subr.mxu0 0.0
      %304 = vmatpush2.msra.mxu0 0.0
      %305 = vmatprep.subr.mxu0 0.0
      %306 = vmatpush2.msra.mxu0 0.0
      %307 = vmatprep.subr.mxu0 0.0
      %308 = vmatpush2.msra.mxu0 0.0
      %309 = vmatprep.subr.mxu0 0.0
      %310 = vmatpush2.msra.mxu0 0.0
      %311 = vmatprep.subr.mxu0 0.0
      %312 = vmatpush2.msra.mxu0 0.0
      %313 = vmatprep.mubr.f32.mxu0 0.0
      %v314 = vand.u32 %v230, 4294901760
      %v315 = vsub.f32 %v230, %v314
      %v316 = vand.u32 %v315, 4294901760
      %v317 = vsub.f32 %v315, %v316
      %v318 = vand.u32 %v317, 4294901760
      %319 = vmatmul.mubr.f32.gmra.mxu0 %v318
      %v320 = vpop.f32.mrf.mxu0
      %v321 = vadd.f32 0.0, %v320
      %v322 = vpop.f32.mrf.mxu0
      %323 = vmatprep.mubr.f32.mxu0 0.0
      %v324 = vand.u32 %v233, 4294901760
      %v325 = vsub.f32 %v233, %v324
      %v326 = vand.u32 %v325, 4294901760
      %v327 = vsub.f32 %v325, %v326
      %v328 = vand.u32 %v327, 4294901760
      %329 = vmatmul.mubr.f32.gmra.mxu0 %v328
      %v330 = vpop.f32.mrf.mxu0
      %v331 = vadd.f32 0.0, %v330
      %v332 = vpop.f32.mrf.mxu0
      %333 = vmatprep.mubr.f32.mxu0 0.0
      %v334 = vand.u32 %v236, 4294901760
      %v335 = vsub.f32 %v236, %v334
      %v336 = vand.u32 %v335, 4294901760
      %v337 = vsub.f32 %v335, %v336
      %v338 = vand.u32 %v337, 4294901760
      %339 = vmatmul.mubr.f32.gmra.mxu0 %v338
      %v340 = vpop.f32.mrf.mxu0
      %v341 = vadd.f32 0.0, %v340
      %v342 = vpop.f32.mrf.mxu0
      %343 = vmatprep.mubr.f32.mxu0 0.0
      %v344 = vand.u32 %v239, 4294901760
      %v345 = vsub.f32 %v239, %v344
      %v346 = vand.u32 %v345, 4294901760
      %v347 = vsub.f32 %v345, %v346
      %v348 = vand.u32 %v347, 4294901760
      %349 = vmatmul.mubr.f32.gmra.mxu0 %v348
      %v350 = vpop.f32.mrf.mxu0
      %v351 = vadd.f32 0.0, %v350
      %v352 = vpop.f32.mrf.mxu0
      %353 = vdwg.mxu0
      %354 = vmatprep.subr.mxu0 0.0
      %355 = vmatpush1.msra.mxu0 0.0
      %356 = vmatprep.subr.mxu0 0.0
      %357 = vmatpush1.msra.mxu0 0.0
      %358 = vmatprep.subr.mxu0 0.0
      %359 = vmatpush1.msra.mxu0 0.0
      %360 = vmatprep.subr.mxu0 0.0
      %361 = vmatpush1.msra.mxu0 0.0
      %362 = vmatprep.subr.mxu0 0.0
      %363 = vmatpush1.msra.mxu0 0.0
      %364 = vmatprep.subr.mxu0 0.0
      %365 = vmatpush1.msra.mxu0 0.0
      %366 = vmatprep.subr.mxu0 0.0
      %367 = vmatpush1.msra.mxu0 0.0
      %368 = vmatprep.subr.mxu0 0.0
      %369 = vmatpush1.msra.mxu0 0.0
      %370 = vmatprep.subr.mxu0 0.0
      %v371 = vand.u32 %v227, 4294901760
      %v372 = vsub.f32 %v227, %v371
      %v373 = vand.u32 %v372, 4294901760
      %v374 = vsub.f32 %v372, %v373
      %v375 = vand.u32 %v374, 4294901760
      %376 = vmatpush1.msra.mxu0 %v375
      %377 = vmatprep.subr.mxu0 0.0
      %v378 = vand.u32 %v226, 4294901760
      %v379 = vsub.f32 %v226, %v378
      %v380 = vand.u32 %v379, 4294901760
      %v381 = vsub.f32 %v379, %v380
      %v382 = vand.u32 %v381, 4294901760
      %383 = vmatpush1.msra.mxu0 %v382
      %384 = vmatprep.subr.mxu0 0.0
      %v385 = vand.u32 %v225, 4294901760
      %v386 = vsub.f32 %v225, %v385
      %v387 = vand.u32 %v386, 4294901760
      %v388 = vsub.f32 %v386, %v387
      %v389 = vand.u32 %v388, 4294901760
      %390 = vmatpush1.msra.mxu0 %v389
      %391 = vmatprep.subr.mxu0 0.0
      %v392 = vand.u32 %v224, 4294901760
      %v393 = vsub.f32 %v224, %v392
      %v394 = vand.u32 %v393, 4294901760
      %v395 = vsub.f32 %v393, %v394
      %v396 = vand.u32 %v395, 4294901760
      %397 = vmatpush1.msra.mxu0 %v396
      %398 = vmatprep.subr.mxu0 0.0
      %v399 = vand.u32 %v223, 4294901760
      %v400 = vsub.f32 %v223, %v399
      %v401 = vand.u32 %v400, 4294901760
      %v402 = vsub.f32 %v400, %v401
      %v403 = vand.u32 %v402, 4294901760
      %404 = vmatpush1.msra.mxu0 %v403
      %405 = vmatprep.subr.mxu0 0.0
      %v406 = vand.u32 %v222, 4294901760
      %v407 = vsub.f32 %v222, %v406
      %v408 = vand.u32 %v407, 4294901760
      %v409 = vsub.f32 %v407, %v408
      %v410 = vand.u32 %v409, 4294901760
      %411 = vmatpush1.msra.mxu0 %v410
      %412 = vmatprep.subr.mxu0 0.0
      %v413 = vand.u32 %v221, 4294901760
      %v414 = vsub.f32 %v221, %v413
      %v415 = vand.u32 %v414, 4294901760
      %v416 = vsub.f32 %v414, %v415
      %v417 = vand.u32 %v416, 4294901760
      %418 = vmatpush1.msra.mxu0 %v417
      %419 = vmatprep.subr.mxu0 0.0
      %v420 = vand.u32 %v220, 4294901760
      %v421 = vsub.f32 %v220, %v420
      %v422 = vand.u32 %v421, 4294901760
      %v423 = vsub.f32 %v421, %v422
      %v424 = vand.u32 %v423, 4294901760
      %425 = vmatpush1.msra.mxu0 %v424
      %426 = vmatprep.subr.mxu0 0.0
      %427 = vmatpush2.msra.mxu0 0.0
      %428 = vmatprep.subr.mxu0 0.0
      %429 = vmatpush2.msra.mxu0 0.0
      %430 = vmatprep.subr.mxu0 0.0
      %431 = vmatpush2.msra.mxu0 0.0
      %432 = vmatprep.subr.mxu0 0.0
      %433 = vmatpush2.msra.mxu0 0.0
      %434 = vmatprep.subr.mxu0 0.0
      %435 = vmatpush2.msra.mxu0 0.0
      %436 = vmatprep.subr.mxu0 0.0
      %437 = vmatpush2.msra.mxu0 0.0
      %438 = vmatprep.subr.mxu0 0.0
      %439 = vmatpush2.msra.mxu0 0.0
      %440 = vmatprep.subr.mxu0 0.0
      %441 = vmatpush2.msra.mxu0 0.0
      %442 = vmatprep.subr.mxu0 0.0
      %443 = vmatpush2.msra.mxu0 0.0
      %444 = vmatprep.subr.mxu0 0.0
      %445 = vmatpush2.msra.mxu0 0.0
      %446 = vmatprep.subr.mxu0 0.0
      %447 = vmatpush2.msra.mxu0 0.0
      %448 = vmatprep.subr.mxu0 0.0
      %449 = vmatpush2.msra.mxu0 0.0
      %450 = vmatprep.subr.mxu0 0.0
      %451 = vmatpush2.msra.mxu0 0.0
      %452 = vmatprep.subr.mxu0 0.0
      %453 = vmatpush2.msra.mxu0 0.0
      %454 = vmatprep.subr.mxu0 0.0
      %455 = vmatpush2.msra.mxu0 0.0
      %456 = vmatprep.subr.mxu0 0.0
      %457 = vmatpush2.msra.mxu0 0.0
      %458 = vmatprep.mubr.f32.mxu0 0.0
      %v459 = vand.u32 %v230, 4294901760
      %460 = vmatmul.mubr.f32.gmra.mxu0 %v459
      %v461 = vpop.f32.mrf.mxu0
      %v462 = vadd.f32 %v321, %v461
      %v463 = vpop.f32.mrf.mxu0
      %464 = vmatprep.mubr.f32.mxu0 0.0
      %v465 = vand.u32 %v233, 4294901760
      %466 = vmatmul.mubr.f32.gmra.mxu0 %v465
      %v467 = vpop.f32.mrf.mxu0
      %v468 = vadd.f32 %v331, %v467
      %v469 = vpop.f32.mrf.mxu0
      %470 = vmatprep.mubr.f32.mxu0 0.0
      %v471 = vand.u32 %v236, 4294901760
      %472 = vmatmul.mubr.f32.gmra.mxu0 %v471
      %v473 = vpop.f32.mrf.mxu0
      %v474 = vadd.f32 %v341, %v473
      %v475 = vpop.f32.mrf.mxu0
      %476 = vmatprep.mubr.f32.mxu0 0.0
      %v477 = vand.u32 %v239, 4294901760
      %478 = vmatmul.mubr.f32.gmra.mxu0 %v477
      %v479 = vpop.f32.mrf.mxu0
      %v480 = vadd.f32 %v351, %v479
      %v481 = vpop.f32.mrf.mxu0
      %482 = vdwg.mxu0
      %483 = vmatprep.subr.mxu0 0.0
      %484 = vmatpush1.msra.mxu0 0.0
      %485 = vmatprep.subr.mxu0 0.0
      %486 = vmatpush1.msra.mxu0 0.0
      %487 = vmatprep.subr.mxu0 0.0
      %488 = vmatpush1.msra.mxu0 0.0
      %489 = vmatprep.subr.mxu0 0.0
      %490 = vmatpush1.msra.mxu0 0.0
      %491 = vmatprep.subr.mxu0 0.0
      %492 = vmatpush1.msra.mxu0 0.0
      %493 = vmatprep.subr.mxu0 0.0
      %494 = vmatpush1.msra.mxu0 0.0
      %495 = vmatprep.subr.mxu0 0.0
      %496 = vmatpush1.msra.mxu0 0.0
      %497 = vmatprep.subr.mxu0 0.0
      %498 = vmatpush1.msra.mxu0 0.0
      %499 = vmatprep.subr.mxu0 0.0
      %v500 = vand.u32 %v227, 4294901760
      %v501 = vsub.f32 %v227, %v500
      %502 = vmatpush1.msra.mxu0 %v501
      %503 = vmatprep.subr.mxu0 0.0
      %v504 = vand.u32 %v226, 4294901760
      %v505 = vsub.f32 %v226, %v504
      %506 = vmatpush1.msra.mxu0 %v505
      %507 = vmatprep.subr.mxu0 0.0
      %v508 = vand.u32 %v225, 4294901760
      %v509 = vsub.f32 %v225, %v508
      %510 = vmatpush1.msra.mxu0 %v509
      %511 = vmatprep.subr.mxu0 0.0
      %v512 = vand.u32 %v224, 4294901760
      %v513 = vsub.f32 %v224, %v512
      %514 = vmatpush1.msra.mxu0 %v513
      %515 = vmatprep.subr.mxu0 0.0
      %v516 = vand.u32 %v223, 4294901760
      %v517 = vsub.f32 %v223, %v516
      %518 = vmatpush1.msra.mxu0 %v517
      %519 = vmatprep.subr.mxu0 0.0
      %v520 = vand.u32 %v222, 4294901760
      %v521 = vsub.f32 %v222, %v520
      %522 = vmatpush1.msra.mxu0 %v521
      %523 = vmatprep.subr.mxu0 0.0
      %v524 = vand.u32 %v221, 4294901760
      %v525 = vsub.f32 %v221, %v524
      %526 = vmatpush1.msra.mxu0 %v525
      %527 = vmatprep.subr.mxu0 0.0
      %v528 = vand.u32 %v220, 4294901760
      %v529 = vsub.f32 %v220, %v528
      %530 = vmatpush1.msra.mxu0 %v529
      %531 = vmatprep.subr.mxu0 0.0
      %532 = vmatpush2.msra.mxu0 0.0
      %533 = vmatprep.subr.mxu0 0.0
      %534 = vmatpush2.msra.mxu0 0.0
      %535 = vmatprep.subr.mxu0 0.0
      %536 = vmatpush2.msra.mxu0 0.0
      %537 = vmatprep.subr.mxu0 0.0
      %538 = vmatpush2.msra.mxu0 0.0
      %539 = vmatprep.subr.mxu0 0.0
      %540 = vmatpush2.msra.mxu0 0.0
      %541 = vmatprep.subr.mxu0 0.0
      %542 = vmatpush2.msra.mxu0 0.0
      %543 = vmatprep.subr.mxu0 0.0
      %544 = vmatpush2.msra.mxu0 0.0
      %545 = vmatprep.subr.mxu0 0.0
      %546 = vmatpush2.msra.mxu0 0.0
      %547 = vmatprep.subr.mxu0 0.0
      %548 = vmatpush2.msra.mxu0 0.0
      %549 = vmatprep.subr.mxu0 0.0
      %550 = vmatpush2.msra.mxu0 0.0
      %551 = vmatprep.subr.mxu0 0.0
      %552 = vmatpush2.msra.mxu0 0.0
      %553 = vmatprep.subr.mxu0 0.0
      %554 = vmatpush2.msra.mxu0 0.0
      %555 = vmatprep.subr.mxu0 0.0
      %556 = vmatpush2.msra.mxu0 0.0
      %557 = vmatprep.subr.mxu0 0.0
      %558 = vmatpush2.msra.mxu0 0.0
      %559 = vmatprep.subr.mxu0 0.0
      %560 = vmatpush2.msra.mxu0 0.0
      %561 = vmatprep.subr.mxu0 0.0
      %562 = vmatpush2.msra.mxu0 0.0
      %563 = vmatprep.mubr.f32.mxu0 0.0
      %v564 = vand.u32 %v230, 4294901760
      %v565 = vsub.f32 %v230, %v564
      %566 = vmatmul.mubr.f32.gmra.mxu0 %v565
      %v567 = vpop.f32.mrf.mxu0
      %v568 = vadd.f32 %v462, %v567
      %v569 = vpop.f32.mrf.mxu0
      %570 = vmatprep.mubr.f32.mxu0 0.0
      %v571 = vand.u32 %v233, 4294901760
      %v572 = vsub.f32 %v233, %v571
      %573 = vmatmul.mubr.f32.gmra.mxu0 %v572
      %v574 = vpop.f32.mrf.mxu0
      %v575 = vadd.f32 %v468, %v574
      %v576 = vpop.f32.mrf.mxu0
      %577 = vmatprep.mubr.f32.mxu0 0.0
      %v578 = vand.u32 %v236, 4294901760
      %v579 = vsub.f32 %v236, %v578
      %580 = vmatmul.mubr.f32.gmra.mxu0 %v579
      %v581 = vpop.f32.mrf.mxu0
      %v582 = vadd.f32 %v474, %v581
      %v583 = vpop.f32.mrf.mxu0
      %584 = vmatprep.mubr.f32.mxu0 0.0
      %v585 = vand.u32 %v239, 4294901760
      %v586 = vsub.f32 %v239, %v585
      %587 = vmatmul.mubr.f32.gmra.mxu0 %v586
      %v588 = vpop.f32.mrf.mxu0
      %v589 = vadd.f32 %v480, %v588
      %v590 = vpop.f32.mrf.mxu0
      %591 = vdwg.mxu0
      %592 = vmatprep.subr.mxu0 0.0
      %593 = vmatpush1.msra.mxu0 0.0
      %594 = vmatprep.subr.mxu0 0.0
      %595 = vmatpush1.msra.mxu0 0.0
      %596 = vmatprep.subr.mxu0 0.0
      %597 = vmatpush1.msra.mxu0 0.0
      %598 = vmatprep.subr.mxu0 0.0
      %599 = vmatpush1.msra.mxu0 0.0
      %600 = vmatprep.subr.mxu0 0.0
      %601 = vmatpush1.msra.mxu0 0.0
      %602 = vmatprep.subr.mxu0 0.0
      %603 = vmatpush1.msra.mxu0 0.0
      %604 = vmatprep.subr.mxu0 0.0
      %605 = vmatpush1.msra.mxu0 0.0
      %606 = vmatprep.subr.mxu0 0.0
      %607 = vmatpush1.msra.mxu0 0.0
      %608 = vmatprep.subr.mxu0 0.0
      %v609 = vand.u32 %v227, 4294901760
      %610 = vmatpush1.msra.mxu0 %v609
      %611 = vmatprep.subr.mxu0 0.0
      %v612 = vand.u32 %v226, 4294901760
      %613 = vmatpush1.msra.mxu0 %v612
      %614 = vmatprep.subr.mxu0 0.0
      %v615 = vand.u32 %v225, 4294901760
      %616 = vmatpush1.msra.mxu0 %v615
      %617 = vmatprep.subr.mxu0 0.0
      %v618 = vand.u32 %v224, 4294901760
      %619 = vmatpush1.msra.mxu0 %v618
      %620 = vmatprep.subr.mxu0 0.0
      %v621 = vand.u32 %v223, 4294901760
      %622 = vmatpush1.msra.mxu0 %v621
      %623 = vmatprep.subr.mxu0 0.0
      %v624 = vand.u32 %v222, 4294901760
      %625 = vmatpush1.msra.mxu0 %v624
      %626 = vmatprep.subr.mxu0 0.0
      %v627 = vand.u32 %v221, 4294901760
      %628 = vmatpush1.msra.mxu0 %v627
      %629 = vmatprep.subr.mxu0 0.0
      %v630 = vand.u32 %v220, 4294901760
      %631 = vmatpush1.msra.mxu0 %v630
      %632 = vmatprep.subr.mxu0 0.0
      %633 = vmatpush2.msra.mxu0 0.0
      %634 = vmatprep.subr.mxu0 0.0
      %635 = vmatpush2.msra.mxu0 0.0
      %636 = vmatprep.subr.mxu0 0.0
      %637 = vmatpush2.msra.mxu0 0.0
      %638 = vmatprep.subr.mxu0 0.0
      %639 = vmatpush2.msra.mxu0 0.0
      %640 = vmatprep.subr.mxu0 0.0
      %641 = vmatpush2.msra.mxu0 0.0
      %642 = vmatprep.subr.mxu0 0.0
      %643 = vmatpush2.msra.mxu0 0.0
      %644 = vmatprep.subr.mxu0 0.0
      %645 = vmatpush2.msra.mxu0 0.0
      %646 = vmatprep.subr.mxu0 0.0
      %647 = vmatpush2.msra.mxu0 0.0
      %648 = vmatprep.subr.mxu0 0.0
      %649 = vmatpush2.msra.mxu0 0.0
      %650 = vmatprep.subr.mxu0 0.0
      %651 = vmatpush2.msra.mxu0 0.0
      %652 = vmatprep.subr.mxu0 0.0
      %653 = vmatpush2.msra.mxu0 0.0
      %654 = vmatprep.subr.mxu0 0.0
      %655 = vmatpush2.msra.mxu0 0.0
      %656 = vmatprep.subr.mxu0 0.0
      %657 = vmatpush2.msra.mxu0 0.0
      %658 = vmatprep.subr.mxu0 0.0
      %659 = vmatpush2.msra.mxu0 0.0
      %660 = vmatprep.subr.mxu0 0.0
      %661 = vmatpush2.msra.mxu0 0.0
      %662 = vmatprep.subr.mxu0 0.0
      %663 = vmatpush2.msra.mxu0 0.0
      %664 = vmatprep.mubr.f32.mxu0 0.0
      %v665 = vand.u32 %v230, 4294901760
      %v666 = vsub.f32 %v230, %v665
      %v667 = vand.u32 %v666, 4294901760
      %668 = vmatmul.mubr.f32.gmra.mxu0 %v667
      %v669 = vpop.f32.mrf.mxu0
      %v670 = vadd.f32 %v568, %v669
      %v671 = vpop.f32.mrf.mxu0
      %672 = vmatprep.mubr.f32.mxu0 0.0
      %v673 = vand.u32 %v233, 4294901760
      %v674 = vsub.f32 %v233, %v673
      %v675 = vand.u32 %v674, 4294901760
      %676 = vmatmul.mubr.f32.gmra.mxu0 %v675
      %v677 = vpop.f32.mrf.mxu0
      %v678 = vadd.f32 %v575, %v677
      %v679 = vpop.f32.mrf.mxu0
      %680 = vmatprep.mubr.f32.mxu0 0.0
      %v681 = vand.u32 %v236, 4294901760
      %v682 = vsub.f32 %v236, %v681
      %v683 = vand.u32 %v682, 4294901760
      %684 = vmatmul.mubr.f32.gmra.mxu0 %v683
      %v685 = vpop.f32.mrf.mxu0
      %v686 = vadd.f32 %v582, %v685
      %v687 = vpop.f32.mrf.mxu0
      %688 = vmatprep.mubr.f32.mxu0 0.0
      %v689 = vand.u32 %v239, 4294901760
      %v690 = vsub.f32 %v239, %v689
      %v691 = vand.u32 %v690, 4294901760
      %692 = vmatmul.mubr.f32.gmra.mxu0 %v691
      %v693 = vpop.f32.mrf.mxu0
      %v694 = vadd.f32 %v589, %v693
      %v695 = vpop.f32.mrf.mxu0
      %696 = vdwg.mxu0
      %697 = vmatprep.subr.mxu0 0.0
      %698 = vmatpush1.msra.mxu0 0.0
      %699 = vmatprep.subr.mxu0 0.0
      %700 = vmatpush1.msra.mxu0 0.0
      %701 = vmatprep.subr.mxu0 0.0
      %702 = vmatpush1.msra.mxu0 0.0
      %703 = vmatprep.subr.mxu0 0.0
      %704 = vmatpush1.msra.mxu0 0.0
      %705 = vmatprep.subr.mxu0 0.0
      %706 = vmatpush1.msra.mxu0 0.0
      %707 = vmatprep.subr.mxu0 0.0
      %708 = vmatpush1.msra.mxu0 0.0
      %709 = vmatprep.subr.mxu0 0.0
      %710 = vmatpush1.msra.mxu0 0.0
      %711 = vmatprep.subr.mxu0 0.0
      %712 = vmatpush1.msra.mxu0 0.0
      %713 = vmatprep.subr.mxu0 0.0
      %v714 = vand.u32 %v227, 4294901760
      %v715 = vsub.f32 %v227, %v714
      %v716 = vand.u32 %v715, 4294901760
      %717 = vmatpush1.msra.mxu0 %v716
      %718 = vmatprep.subr.mxu0 0.0
      %v719 = vand.u32 %v226, 4294901760
      %v720 = vsub.f32 %v226, %v719
      %v721 = vand.u32 %v720, 4294901760
      %722 = vmatpush1.msra.mxu0 %v721
      %723 = vmatprep.subr.mxu0 0.0
      %v724 = vand.u32 %v225, 4294901760
      %v725 = vsub.f32 %v225, %v724
      %v726 = vand.u32 %v725, 4294901760
      %727 = vmatpush1.msra.mxu0 %v726
      %728 = vmatprep.subr.mxu0 0.0
      %v729 = vand.u32 %v224, 4294901760
      %v730 = vsub.f32 %v224, %v729
      %v731 = vand.u32 %v730, 4294901760
      %732 = vmatpush1.msra.mxu0 %v731
      %733 = vmatprep.subr.mxu0 0.0
      %v734 = vand.u32 %v223, 4294901760
      %v735 = vsub.f32 %v223, %v734
      %v736 = vand.u32 %v735, 4294901760
      %737 = vmatpush1.msra.mxu0 %v736
      %738 = vmatprep.subr.mxu0 0.0
      %v739 = vand.u32 %v222, 4294901760
      %v740 = vsub.f32 %v222, %v739
      %v741 = vand.u32 %v740, 4294901760
      %742 = vmatpush1.msra.mxu0 %v741
      %743 = vmatprep.subr.mxu0 0.0
      %v744 = vand.u32 %v221, 4294901760
      %v745 = vsub.f32 %v221, %v744
      %v746 = vand.u32 %v745, 4294901760
      %747 = vmatpush1.msra.mxu0 %v746
      %748 = vmatprep.subr.mxu0 0.0
      %v749 = vand.u32 %v220, 4294901760
      %v750 = vsub.f32 %v220, %v749
      %v751 = vand.u32 %v750, 4294901760
      %752 = vmatpush1.msra.mxu0 %v751
      %753 = vmatprep.subr.mxu0 0.0
      %754 = vmatpush2.msra.mxu0 0.0
      %755 = vmatprep.subr.mxu0 0.0
      %756 = vmatpush2.msra.mxu0 0.0
      %757 = vmatprep.subr.mxu0 0.0
      %758 = vmatpush2.msra.mxu0 0.0
      %759 = vmatprep.subr.mxu0 0.0
      %760 = vmatpush2.msra.mxu0 0.0
      %761 = vmatprep.subr.mxu0 0.0
      %762 = vmatpush2.msra.mxu0 0.0
      %763 = vmatprep.subr.mxu0 0.0
      %764 = vmatpush2.msra.mxu0 0.0
      %765 = vmatprep.subr.mxu0 0.0
      %766 = vmatpush2.msra.mxu0 0.0
      %767 = vmatprep.subr.mxu0 0.0
      %768 = vmatpush2.msra.mxu0 0.0
      %769 = vmatprep.subr.mxu0 0.0
      %770 = vmatpush2.msra.mxu0 0.0
      %771 = vmatprep.subr.mxu0 0.0
      %772 = vmatpush2.msra.mxu0 0.0
      %773 = vmatprep.subr.mxu0 0.0
      %774 = vmatpush2.msra.mxu0 0.0
      %775 = vmatprep.subr.mxu0 0.0
      %776 = vmatpush2.msra.mxu0 0.0
      %777 = vmatprep.subr.mxu0 0.0
      %778 = vmatpush2.msra.mxu0 0.0
      %779 = vmatprep.subr.mxu0 0.0
      %780 = vmatpush2.msra.mxu0 0.0
      %781 = vmatprep.subr.mxu0 0.0
      %782 = vmatpush2.msra.mxu0 0.0
      %783 = vmatprep.subr.mxu0 0.0
      %784 = vmatpush2.msra.mxu0 0.0
      %785 = vmatprep.mubr.f32.mxu0 0.0
      %v786 = vand.u32 %v230, 4294901760
      %787 = vmatmul.mubr.f32.gmra.mxu0 %v786
      %v788 = vpop.f32.mrf.mxu0
      %v789 = vadd.f32 %v670, %v788
      %v790 = vpop.f32.mrf.mxu0
      %791 = vmatprep.mubr.f32.mxu0 0.0
      %v792 = vand.u32 %v233, 4294901760
      %793 = vmatmul.mubr.f32.gmra.mxu0 %v792
      %v794 = vpop.f32.mrf.mxu0
      %v795 = vadd.f32 %v678, %v794
      %v796 = vpop.f32.mrf.mxu0
      %797 = vmatprep.mubr.f32.mxu0 0.0
      %v798 = vand.u32 %v236, 4294901760
      %799 = vmatmul.mubr.f32.gmra.mxu0 %v798
      %v800 = vpop.f32.mrf.mxu0
      %v801 = vadd.f32 %v686, %v800
      %v802 = vpop.f32.mrf.mxu0
      %803 = vmatprep.mubr.f32.mxu0 0.0
      %v804 = vand.u32 %v239, 4294901760
      %805 = vmatmul.mubr.f32.gmra.mxu0 %v804
      %v806 = vpop.f32.mrf.mxu0
      %v807 = vadd.f32 %v694, %v806
      %v808 = vpop.f32.mrf.mxu0
      %809 = vdwg.mxu0
      %810 = vmatprep.subr.mxu0 0.0
      %811 = vmatpush1.msra.mxu0 0.0
      %812 = vmatprep.subr.mxu0 0.0
      %813 = vmatpush1.msra.mxu0 0.0
      %814 = vmatprep.subr.mxu0 0.0
      %815 = vmatpush1.msra.mxu0 0.0
      %816 = vmatprep.subr.mxu0 0.0
      %817 = vmatpush1.msra.mxu0 0.0
      %818 = vmatprep.subr.mxu0 0.0
      %819 = vmatpush1.msra.mxu0 0.0
      %820 = vmatprep.subr.mxu0 0.0
      %821 = vmatpush1.msra.mxu0 0.0
      %822 = vmatprep.subr.mxu0 0.0
      %823 = vmatpush1.msra.mxu0 0.0
      %824 = vmatprep.subr.mxu0 0.0
      %825 = vmatpush1.msra.mxu0 0.0
      %826 = vmatprep.subr.mxu0 0.0
      %v827 = vand.u32 %v227, 4294901760
      %828 = vmatpush1.msra.mxu0 %v827
      %829 = vmatprep.subr.mxu0 0.0
      %v830 = vand.u32 %v226, 4294901760
      %831 = vmatpush1.msra.mxu0 %v830
      %832 = vmatprep.subr.mxu0 0.0
      %v833 = vand.u32 %v225, 4294901760
      %834 = vmatpush1.msra.mxu0 %v833
      %835 = vmatprep.subr.mxu0 0.0
      %v836 = vand.u32 %v224, 4294901760
      %837 = vmatpush1.msra.mxu0 %v836
      %838 = vmatprep.subr.mxu0 0.0
      %v839 = vand.u32 %v223, 4294901760
      %840 = vmatpush1.msra.mxu0 %v839
      %841 = vmatprep.subr.mxu0 0.0
      %v842 = vand.u32 %v222, 4294901760
      %843 = vmatpush1.msra.mxu0 %v842
      %844 = vmatprep.subr.mxu0 0.0
      %v845 = vand.u32 %v221, 4294901760
      %846 = vmatpush1.msra.mxu0 %v845
      %847 = vmatprep.subr.mxu0 0.0
      %v848 = vand.u32 %v220, 4294901760
      %849 = vmatpush1.msra.mxu0 %v848
      %850 = vmatprep.subr.mxu0 0.0
      %851 = vmatpush2.msra.mxu0 0.0
      %852 = vmatprep.subr.mxu0 0.0
      %853 = vmatpush2.msra.mxu0 0.0
      %854 = vmatprep.subr.mxu0 0.0
      %855 = vmatpush2.msra.mxu0 0.0
      %856 = vmatprep.subr.mxu0 0.0
      %857 = vmatpush2.msra.mxu0 0.0
      %858 = vmatprep.subr.mxu0 0.0
      %859 = vmatpush2.msra.mxu0 0.0
      %860 = vmatprep.subr.mxu0 0.0
      %861 = vmatpush2.msra.mxu0 0.0
      %862 = vmatprep.subr.mxu0 0.0
      %863 = vmatpush2.msra.mxu0 0.0
      %864 = vmatprep.subr.mxu0 0.0
      %865 = vmatpush2.msra.mxu0 0.0
      %866 = vmatprep.subr.mxu0 0.0
      %867 = vmatpush2.msra.mxu0 0.0
      %868 = vmatprep.subr.mxu0 0.0
      %869 = vmatpush2.msra.mxu0 0.0
      %870 = vmatprep.subr.mxu0 0.0
      %871 = vmatpush2.msra.mxu0 0.0
      %872 = vmatprep.subr.mxu0 0.0
      %873 = vmatpush2.msra.mxu0 0.0
      %874 = vmatprep.subr.mxu0 0.0
      %875 = vmatpush2.msra.mxu0 0.0
      %876 = vmatprep.subr.mxu0 0.0
      %877 = vmatpush2.msra.mxu0 0.0
      %878 = vmatprep.subr.mxu0 0.0
      %879 = vmatpush2.msra.mxu0 0.0
      %880 = vmatprep.subr.mxu0 0.0
      %881 = vmatpush2.msra.mxu0 0.0
      %882 = vmatprep.mubr.f32.mxu0 0.0
      %v883 = vand.u32 %v230, 4294901760
      %884 = vmatmul.mubr.f32.gmra.mxu0 %v883
      %v885 = vpop.f32.mrf.mxu0
      %v886 = vadd.f32 %v789, %v885
      %v887 = vpop.f32.mrf.mxu0
      %888 = vmatprep.mubr.f32.mxu0 0.0
      %v889 = vand.u32 %v233, 4294901760
      %890 = vmatmul.mubr.f32.gmra.mxu0 %v889
      %v891 = vpop.f32.mrf.mxu0
      %v892 = vadd.f32 %v795, %v891
      %v893 = vpop.f32.mrf.mxu0
      %894 = vmatprep.mubr.f32.mxu0 0.0
      %v895 = vand.u32 %v236, 4294901760
      %896 = vmatmul.mubr.f32.gmra.mxu0 %v895
      %v897 = vpop.f32.mrf.mxu0
      %v898 = vadd.f32 %v801, %v897
      %v899 = vpop.f32.mrf.mxu0
      %900 = vmatprep.mubr.f32.mxu0 0.0
      %v901 = vand.u32 %v239, 4294901760
      %902 = vmatmul.mubr.f32.gmra.mxu0 %v901
      %v903 = vpop.f32.mrf.mxu0
      %v904 = vadd.f32 %v807, %v903
      %v905 = vpop.f32.mrf.mxu0
      %906 = vdwg.mxu0
      %v907 = vld [vmem:[%s2] sm:$0xf]
      %vm908 = vcmask 31744
      %v910 = vsel %vm908, %v886, 0
      %v913 = vsel %vm908, %v892, 0
      %v916 = vsel %vm908, %v898, 0
      %v919 = vsel %vm908, %v904, 0
      %vm921 = vcmask 1043456
      %v923 = vsel %vm921, %v907, 0
      %925 = vmatprep.subr.mxu0 0.0
      %926 = vmatpush1.msra.mxu0 0.0
      %927 = vmatprep.subr.mxu0 0.0
      %928 = vmatpush1.msra.mxu0 0.0
      %929 = vmatprep.subr.mxu0 0.0
      %930 = vmatpush1.msra.mxu0 0.0
      %931 = vmatprep.subr.mxu0 0.0
      %932 = vmatpush1.msra.mxu0 0.0
      %933 = vmatprep.subr.mxu0 0.0
      %934 = vmatpush1.msra.mxu0 0.0
      %935 = vmatprep.subr.mxu0 0.0
      %936 = vmatpush1.msra.mxu0 0.0
      %937 = vmatprep.subr.mxu0 0.0
      %938 = vmatpush1.msra.mxu0 0.0
      %939 = vmatprep.subr.mxu0 0.0
      %940 = vmatpush1.msra.mxu0 0.0
      %941 = vmatprep.subr.mxu0 0.0
      %942 = vmatpush1.msra.mxu0 0.0
      %943 = vmatprep.subr.mxu0 0.0
      %944 = vmatpush1.msra.mxu0 0.0
      %945 = vmatprep.subr.mxu0 0.0
      %946 = vmatpush1.msra.mxu0 0.0
      %947 = vmatprep.subr.mxu0 0.0
      %948 = vmatpush1.msra.mxu0 0.0
      %949 = vmatprep.subr.mxu0 0.0
      %950 = vmatpush1.msra.mxu0 0.0
      %951 = vmatprep.subr.mxu0 0.0
      %952 = vmatpush1.msra.mxu0 0.0
      %953 = vmatprep.subr.mxu0 0.0
      %954 = vmatpush1.msra.mxu0 0.0
      %955 = vmatprep.subr.mxu0 0.0
      %v956 = vand.u32 %v923, 4294901760
      %957 = vmatpush1.msra.mxu0 %v956
      %958 = vmatprep.subr.mxu0 0.0
      %959 = vmatpush2.msra.mxu0 0.0
      %960 = vmatprep.subr.mxu0 0.0
      %961 = vmatpush2.msra.mxu0 0.0
      %962 = vmatprep.subr.mxu0 0.0
      %963 = vmatpush2.msra.mxu0 0.0
      %964 = vmatprep.subr.mxu0 0.0
      %965 = vmatpush2.msra.mxu0 0.0
      %966 = vmatprep.subr.mxu0 0.0
      %967 = vmatpush2.msra.mxu0 0.0
      %968 = vmatprep.subr.mxu0 0.0
      %969 = vmatpush2.msra.mxu0 0.0
      %970 = vmatprep.subr.mxu0 0.0
      %971 = vmatpush2.msra.mxu0 0.0
      %972 = vmatprep.subr.mxu0 0.0
      %973 = vmatpush2.msra.mxu0 0.0
      %974 = vmatprep.subr.mxu0 0.0
      %975 = vmatpush2.msra.mxu0 0.0
      %976 = vmatprep.subr.mxu0 0.0
      %977 = vmatpush2.msra.mxu0 0.0
      %978 = vmatprep.subr.mxu0 0.0
      %979 = vmatpush2.msra.mxu0 0.0
      %980 = vmatprep.subr.mxu0 0.0
      %981 = vmatpush2.msra.mxu0 0.0
      %982 = vmatprep.subr.mxu0 0.0
      %983 = vmatpush2.msra.mxu0 0.0
      %984 = vmatprep.subr.mxu0 0.0
      %985 = vmatpush2.msra.mxu0 0.0
      %986 = vmatprep.subr.mxu0 0.0
      %987 = vmatpush2.msra.mxu0 0.0
      %988 = vmatprep.subr.mxu0 0.0
      %989 = vmatpush2.msra.mxu0 0.0
      %990 = vmatprep.mubr.f32.mxu0 0.0
      %v991 = vand.u32 %v910, 4294901760
      %v992 = vsub.f32 %v910, %v991
      %v993 = vand.u32 %v992, 4294901760
      %v994 = vsub.f32 %v992, %v993
      %v995 = vand.u32 %v994, 4294901760
      %996 = vmatmul.mubr.f32.gmra.mxu0 %v995
      %v997 = vpop.f32.mrf.mxu0
      %v998 = vadd.f32 0.0, %v997
      %v999 = vpop.f32.mrf.mxu0
      %1000 = vmatprep.mubr.f32.mxu0 0.0
      %v1001 = vand.u32 %v913, 4294901760
      %v1002 = vsub.f32 %v913, %v1001
      %v1003 = vand.u32 %v1002, 4294901760
      %v1004 = vsub.f32 %v1002, %v1003
      %v1005 = vand.u32 %v1004, 4294901760
      %1006 = vmatmul.mubr.f32.gmra.mxu0 %v1005
      %v1007 = vpop.f32.mrf.mxu0
      %v1008 = vadd.f32 0.0, %v1007
      %v1009 = vpop.f32.mrf.mxu0
      %1010 = vmatprep.mubr.f32.mxu0 0.0
      %v1011 = vand.u32 %v916, 4294901760
      %v1012 = vsub.f32 %v916, %v1011
      %v1013 = vand.u32 %v1012, 4294901760
      %v1014 = vsub.f32 %v1012, %v1013
      %v1015 = vand.u32 %v1014, 4294901760
      %1016 = vmatmul.mubr.f32.gmra.mxu0 %v1015
      %v1017 = vpop.f32.mrf.mxu0
      %v1018 = vadd.f32 0.0, %v1017
      %v1019 = vpop.f32.mrf.mxu0
      %1020 = vmatprep.mubr.f32.mxu0 0.0
      %v1021 = vand.u32 %v919, 4294901760
      %v1022 = vsub.f32 %v919, %v1021
      %v1023 = vand.u32 %v1022, 4294901760
      %v1024 = vsub.f32 %v1022, %v1023
      %v1025 = vand.u32 %v1024, 4294901760
      %1026 = vmatmul.mubr.f32.gmra.mxu0 %v1025
      %v1027 = vpop.f32.mrf.mxu0
      %v1028 = vadd.f32 0.0, %v1027
      %v1029 = vpop.f32.mrf.mxu0
      %1030 = vdwg.mxu0
      %1031 = vmatprep.subr.mxu0 0.0
      %1032 = vmatpush1.msra.mxu0 0.0
      %1033 = vmatprep.subr.mxu0 0.0
      %1034 = vmatpush1.msra.mxu0 0.0
      %1035 = vmatprep.subr.mxu0 0.0
      %1036 = vmatpush1.msra.mxu0 0.0
      %1037 = vmatprep.subr.mxu0 0.0
      %1038 = vmatpush1.msra.mxu0 0.0
      %1039 = vmatprep.subr.mxu0 0.0
      %1040 = vmatpush1.msra.mxu0 0.0
      %1041 = vmatprep.subr.mxu0 0.0
      %1042 = vmatpush1.msra.mxu0 0.0
      %1043 = vmatprep.subr.mxu0 0.0
      %1044 = vmatpush1.msra.mxu0 0.0
      %1045 = vmatprep.subr.mxu0 0.0
      %1046 = vmatpush1.msra.mxu0 0.0
      %1047 = vmatprep.subr.mxu0 0.0
      %1048 = vmatpush1.msra.mxu0 0.0
      %1049 = vmatprep.subr.mxu0 0.0
      %1050 = vmatpush1.msra.mxu0 0.0
      %1051 = vmatprep.subr.mxu0 0.0
      %1052 = vmatpush1.msra.mxu0 0.0
      %1053 = vmatprep.subr.mxu0 0.0
      %1054 = vmatpush1.msra.mxu0 0.0
      %1055 = vmatprep.subr.mxu0 0.0
      %1056 = vmatpush1.msra.mxu0 0.0
      %1057 = vmatprep.subr.mxu0 0.0
      %1058 = vmatpush1.msra.mxu0 0.0
      %1059 = vmatprep.subr.mxu0 0.0
      %1060 = vmatpush1.msra.mxu0 0.0
      %1061 = vmatprep.subr.mxu0 0.0
      %v1062 = vand.u32 %v923, 4294901760
      %v1063 = vsub.f32 %v923, %v1062
      %v1064 = vand.u32 %v1063, 4294901760
      %v1065 = vsub.f32 %v1063, %v1064
      %v1066 = vand.u32 %v1065, 4294901760
      %1067 = vmatpush1.msra.mxu0 %v1066
      %1068 = vmatprep.subr.mxu0 0.0
      %1069 = vmatpush2.msra.mxu0 0.0
      %1070 = vmatprep.subr.mxu0 0.0
      %1071 = vmatpush2.msra.mxu0 0.0
      %1072 = vmatprep.subr.mxu0 0.0
      %1073 = vmatpush2.msra.mxu0 0.0
      %1074 = vmatprep.subr.mxu0 0.0
      %1075 = vmatpush2.msra.mxu0 0.0
      %1076 = vmatprep.subr.mxu0 0.0
      %1077 = vmatpush2.msra.mxu0 0.0
      %1078 = vmatprep.subr.mxu0 0.0
      %1079 = vmatpush2.msra.mxu0 0.0
      %1080 = vmatprep.subr.mxu0 0.0
      %1081 = vmatpush2.msra.mxu0 0.0
      %1082 = vmatprep.subr.mxu0 0.0
      %1083 = vmatpush2.msra.mxu0 0.0
      %1084 = vmatprep.subr.mxu0 0.0
      %1085 = vmatpush2.msra.mxu0 0.0
      %1086 = vmatprep.subr.mxu0 0.0
      %1087 = vmatpush2.msra.mxu0 0.0
      %1088 = vmatprep.subr.mxu0 0.0
      %1089 = vmatpush2.msra.mxu0 0.0
      %1090 = vmatprep.subr.mxu0 0.0
      %1091 = vmatpush2.msra.mxu0 0.0
      %1092 = vmatprep.subr.mxu0 0.0
      %1093 = vmatpush2.msra.mxu0 0.0
      %1094 = vmatprep.subr.mxu0 0.0
      %1095 = vmatpush2.msra.mxu0 0.0
      %1096 = vmatprep.subr.mxu0 0.0
      %1097 = vmatpush2.msra.mxu0 0.0
      %1098 = vmatprep.subr.mxu0 0.0
      %1099 = vmatpush2.msra.mxu0 0.0
      %1100 = vmatprep.mubr.f32.mxu0 0.0
      %v1101 = vand.u32 %v910, 4294901760
      %1102 = vmatmul.mubr.f32.gmra.mxu0 %v1101
      %v1103 = vpop.f32.mrf.mxu0
      %v1104 = vadd.f32 %v998, %v1103
      %v1105 = vpop.f32.mrf.mxu0
      %1106 = vmatprep.mubr.f32.mxu0 0.0
      %v1107 = vand.u32 %v913, 4294901760
      %1108 = vmatmul.mubr.f32.gmra.mxu0 %v1107
      %v1109 = vpop.f32.mrf.mxu0
      %v1110 = vadd.f32 %v1008, %v1109
      %v1111 = vpop.f32.mrf.mxu0
      %1112 = vmatprep.mubr.f32.mxu0 0.0
      %v1113 = vand.u32 %v916, 4294901760
      %1114 = vmatmul.mubr.f32.gmra.mxu0 %v1113
      %v1115 = vpop.f32.mrf.mxu0
      %v1116 = vadd.f32 %v1018, %v1115
      %v1117 = vpop.f32.mrf.mxu0
      %1118 = vmatprep.mubr.f32.mxu0 0.0
      %v1119 = vand.u32 %v919, 4294901760
      %1120 = vmatmul.mubr.f32.gmra.mxu0 %v1119
      %v1121 = vpop.f32.mrf.mxu0
      %v1122 = vadd.f32 %v1028, %v1121
      %v1123 = vpop.f32.mrf.mxu0
      %1124 = vdwg.mxu0
      %1125 = vmatprep.subr.mxu0 0.0
      %1126 = vmatpush1.msra.mxu0 0.0
      %1127 = vmatprep.subr.mxu0 0.0
      %1128 = vmatpush1.msra.mxu0 0.0
      %1129 = vmatprep.subr.mxu0 0.0
      %1130 = vmatpush1.msra.mxu0 0.0
      %1131 = vmatprep.subr.mxu0 0.0
      %1132 = vmatpush1.msra.mxu0 0.0
      %1133 = vmatprep.subr.mxu0 0.0
      %1134 = vmatpush1.msra.mxu0 0.0
      %1135 = vmatprep.subr.mxu0 0.0
      %1136 = vmatpush1.msra.mxu0 0.0
      %1137 = vmatprep.subr.mxu0 0.0
      %1138 = vmatpush1.msra.mxu0 0.0
      %1139 = vmatprep.subr.mxu0 0.0
      %1140 = vmatpush1.msra.mxu0 0.0
      %1141 = vmatprep.subr.mxu0 0.0
      %1142 = vmatpush1.msra.mxu0 0.0
      %1143 = vmatprep.subr.mxu0 0.0
      %1144 = vmatpush1.msra.mxu0 0.0
      %1145 = vmatprep.subr.mxu0 0.0
      %1146 = vmatpush1.msra.mxu0 0.0
      %1147 = vmatprep.subr.mxu0 0.0
      %1148 = vmatpush1.msra.mxu0 0.0
      %1149 = vmatprep.subr.mxu0 0.0
      %1150 = vmatpush1.msra.mxu0 0.0
      %1151 = vmatprep.subr.mxu0 0.0
      %1152 = vmatpush1.msra.mxu0 0.0
      %1153 = vmatprep.subr.mxu0 0.0
      %1154 = vmatpush1.msra.mxu0 0.0
      %1155 = vmatprep.subr.mxu0 0.0
      %v1156 = vand.u32 %v923, 4294901760
      %v1157 = vsub.f32 %v923, %v1156
      %1158 = vmatpush1.msra.mxu0 %v1157
      %1159 = vmatprep.subr.mxu0 0.0
      %1160 = vmatpush2.msra.mxu0 0.0
      %1161 = vmatprep.subr.mxu0 0.0
      %1162 = vmatpush2.msra.mxu0 0.0
      %1163 = vmatprep.subr.mxu0 0.0
      %1164 = vmatpush2.msra.mxu0 0.0
      %1165 = vmatprep.subr.mxu0 0.0
      %1166 = vmatpush2.msra.mxu0 0.0
      %1167 = vmatprep.subr.mxu0 0.0
      %1168 = vmatpush2.msra.mxu0 0.0
      %1169 = vmatprep.subr.mxu0 0.0
      %1170 = vmatpush2.msra.mxu0 0.0
      %1171 = vmatprep.subr.mxu0 0.0
      %1172 = vmatpush2.msra.mxu0 0.0
      %1173 = vmatprep.subr.mxu0 0.0
      %1174 = vmatpush2.msra.mxu0 0.0
      %1175 = vmatprep.subr.mxu0 0.0
      %1176 = vmatpush2.msra.mxu0 0.0
      %1177 = vmatprep.subr.mxu0 0.0
      %1178 = vmatpush2.msra.mxu0 0.0
      %1179 = vmatprep.subr.mxu0 0.0
      %1180 = vmatpush2.msra.mxu0 0.0
      %1181 = vmatprep.subr.mxu0 0.0
      %1182 = vmatpush2.msra.mxu0 0.0
      %1183 = vmatprep.subr.mxu0 0.0
      %1184 = vmatpush2.msra.mxu0 0.0
      %1185 = vmatprep.subr.mxu0 0.0
      %1186 = vmatpush2.msra.mxu0 0.0
      %1187 = vmatprep.subr.mxu0 0.0
      %1188 = vmatpush2.msra.mxu0 0.0
      %1189 = vmatprep.subr.mxu0 0.0
      %1190 = vmatpush2.msra.mxu0 0.0
      %1191 = vmatprep.mubr.f32.mxu0 0.0
      %v1192 = vand.u32 %v910, 4294901760
      %v1193 = vsub.f32 %v910, %v1192
      %1194 = vmatmul.mubr.f32.gmra.mxu0 %v1193
      %v1195 = vpop.f32.mrf.mxu0
      %v1196 = vadd.f32 %v1104, %v1195
      %v1197 = vpop.f32.mrf.mxu0
      %1198 = vmatprep.mubr.f32.mxu0 0.0
      %v1199 = vand.u32 %v913, 4294901760
      %v1200 = vsub.f32 %v913, %v1199
      %1201 = vmatmul.mubr.f32.gmra.mxu0 %v1200
      %v1202 = vpop.f32.mrf.mxu0
      %v1203 = vadd.f32 %v1110, %v1202
      %v1204 = vpop.f32.mrf.mxu0
      %1205 = vmatprep.mubr.f32.mxu0 0.0
      %v1206 = vand.u32 %v916, 4294901760
      %v1207 = vsub.f32 %v916, %v1206
      %1208 = vmatmul.mubr.f32.gmra.mxu0 %v1207
      %v1209 = vpop.f32.mrf.mxu0
      %v1210 = vadd.f32 %v1116, %v1209
      %v1211 = vpop.f32.mrf.mxu0
      %1212 = vmatprep.mubr.f32.mxu0 0.0
      %v1213 = vand.u32 %v919, 4294901760
      %v1214 = vsub.f32 %v919, %v1213
      %1215 = vmatmul.mubr.f32.gmra.mxu0 %v1214
      %v1216 = vpop.f32.mrf.mxu0
      %v1217 = vadd.f32 %v1122, %v1216
      %v1218 = vpop.f32.mrf.mxu0
      %1219 = vdwg.mxu0
      %1220 = vmatprep.subr.mxu0 0.0
      %1221 = vmatpush1.msra.mxu0 0.0
      %1222 = vmatprep.subr.mxu0 0.0
      %1223 = vmatpush1.msra.mxu0 0.0
      %1224 = vmatprep.subr.mxu0 0.0
      %1225 = vmatpush1.msra.mxu0 0.0
      %1226 = vmatprep.subr.mxu0 0.0
      %1227 = vmatpush1.msra.mxu0 0.0
      %1228 = vmatprep.subr.mxu0 0.0
      %1229 = vmatpush1.msra.mxu0 0.0
      %1230 = vmatprep.subr.mxu0 0.0
      %1231 = vmatpush1.msra.mxu0 0.0
      %1232 = vmatprep.subr.mxu0 0.0
      %1233 = vmatpush1.msra.mxu0 0.0
      %1234 = vmatprep.subr.mxu0 0.0
      %1235 = vmatpush1.msra.mxu0 0.0
      %1236 = vmatprep.subr.mxu0 0.0
      %1237 = vmatpush1.msra.mxu0 0.0
      %1238 = vmatprep.subr.mxu0 0.0
      %1239 = vmatpush1.msra.mxu0 0.0
      %1240 = vmatprep.subr.mxu0 0.0
      %1241 = vmatpush1.msra.mxu0 0.0
      %1242 = vmatprep.subr.mxu0 0.0
      %1243 = vmatpush1.msra.mxu0 0.0
      %1244 = vmatprep.subr.mxu0 0.0
      %1245 = vmatpush1.msra.mxu0 0.0
      %1246 = vmatprep.subr.mxu0 0.0
      %1247 = vmatpush1.msra.mxu0 0.0
      %1248 = vmatprep.subr.mxu0 0.0
      %1249 = vmatpush1.msra.mxu0 0.0
      %1250 = vmatprep.subr.mxu0 0.0
      %v1251 = vand.u32 %v923, 4294901760
      %1252 = vmatpush1.msra.mxu0 %v1251
      %1253 = vmatprep.subr.mxu0 0.0
      %1254 = vmatpush2.msra.mxu0 0.0
      %1255 = vmatprep.subr.mxu0 0.0
      %1256 = vmatpush2.msra.mxu0 0.0
      %1257 = vmatprep.subr.mxu0 0.0
      %1258 = vmatpush2.msra.mxu0 0.0
      %1259 = vmatprep.subr.mxu0 0.0
      %1260 = vmatpush2.msra.mxu0 0.0
      %1261 = vmatprep.subr.mxu0 0.0
      %1262 = vmatpush2.msra.mxu0 0.0
      %1263 = vmatprep.subr.mxu0 0.0
      %1264 = vmatpush2.msra.mxu0 0.0
      %1265 = vmatprep.subr.mxu0 0.0
      %1266 = vmatpush2.msra.mxu0 0.0
      %1267 = vmatprep.subr.mxu0 0.0
      %1268 = vmatpush2.msra.mxu0 0.0
      %1269 = vmatprep.subr.mxu0 0.0
      %1270 = vmatpush2.msra.mxu0 0.0
      %1271 = vmatprep.subr.mxu0 0.0
      %1272 = vmatpush2.msra.mxu0 0.0
      %1273 = vmatprep.subr.mxu0 0.0
      %1274 = vmatpush2.msra.mxu0 0.0
      %1275 = vmatprep.subr.mxu0 0.0
      %1276 = vmatpush2.msra.mxu0 0.0
      %1277 = vmatprep.subr.mxu0 0.0
      %1278 = vmatpush2.msra.mxu0 0.0
      %1279 = vmatprep.subr.mxu0 0.0
      %1280 = vmatpush2.msra.mxu0 0.0
      %1281 = vmatprep.subr.mxu0 0.0
      %1282 = vmatpush2.msra.mxu0 0.0
      %1283 = vmatprep.subr.mxu0 0.0
      %1284 = vmatpush2.msra.mxu0 0.0
      %1285 = vmatprep.mubr.f32.mxu0 0.0
      %v1286 = vand.u32 %v910, 4294901760
      %v1287 = vsub.f32 %v910, %v1286
      %v1288 = vand.u32 %v1287, 4294901760
      %1289 = vmatmul.mubr.f32.gmra.mxu0 %v1288
      %v1290 = vpop.f32.mrf.mxu0
      %v1291 = vadd.f32 %v1196, %v1290
      %v1292 = vpop.f32.mrf.mxu0
      %1293 = vmatprep.mubr.f32.mxu0 0.0
      %v1294 = vand.u32 %v913, 4294901760
      %v1295 = vsub.f32 %v913, %v1294
      %v1296 = vand.u32 %v1295, 4294901760
      %1297 = vmatmul.mubr.f32.gmra.mxu0 %v1296
      %v1298 = vpop.f32.mrf.mxu0
      %v1299 = vadd.f32 %v1203, %v1298
      %v1300 = vpop.f32.mrf.mxu0
      %1301 = vmatprep.mubr.f32.mxu0 0.0
      %v1302 = vand.u32 %v916, 4294901760
      %v1303 = vsub.f32 %v916, %v1302
      %v1304 = vand.u32 %v1303, 4294901760
      %1305 = vmatmul.mubr.f32.gmra.mxu0 %v1304
      %v1306 = vpop.f32.mrf.mxu0
      %v1307 = vadd.f32 %v1210, %v1306
      %v1308 = vpop.f32.mrf.mxu0
      %1309 = vmatprep.mubr.f32.mxu0 0.0
      %v1310 = vand.u32 %v919, 4294901760
      %v1311 = vsub.f32 %v919, %v1310
      %v1312 = vand.u32 %v1311, 4294901760
      %1313 = vmatmul.mubr.f32.gmra.mxu0 %v1312
      %v1314 = vpop.f32.mrf.mxu0
      %v1315 = vadd.f32 %v1217, %v1314
      %v1316 = vpop.f32.mrf.mxu0
      %1317 = vdwg.mxu0
      %1318 = vmatprep.subr.mxu0 0.0
      %1319 = vmatpush1.msra.mxu0 0.0
      %1320 = vmatprep.subr.mxu0 0.0
      %1321 = vmatpush1.msra.mxu0 0.0
      %1322 = vmatprep.subr.mxu0 0.0
      %1323 = vmatpush1.msra.mxu0 0.0
      %1324 = vmatprep.subr.mxu0 0.0
      %1325 = vmatpush1.msra.mxu0 0.0
      %1326 = vmatprep.subr.mxu0 0.0
      %1327 = vmatpush1.msra.mxu0 0.0
      %1328 = vmatprep.subr.mxu0 0.0
      %1329 = vmatpush1.msra.mxu0 0.0
      %1330 = vmatprep.subr.mxu0 0.0
      %1331 = vmatpush1.msra.mxu0 0.0
      %1332 = vmatprep.subr.mxu0 0.0
      %1333 = vmatpush1.msra.mxu0 0.0
      %1334 = vmatprep.subr.mxu0 0.0
      %1335 = vmatpush1.msra.mxu0 0.0
      %1336 = vmatprep.subr.mxu0 0.0
      %1337 = vmatpush1.msra.mxu0 0.0
      %1338 = vmatprep.subr.mxu0 0.0
      %1339 = vmatpush1.msra.mxu0 0.0
      %1340 = vmatprep.subr.mxu0 0.0
      %1341 = vmatpush1.msra.mxu0 0.0
      %1342 = vmatprep.subr.mxu0 0.0
      %1343 = vmatpush1.msra.mxu0 0.0
      %1344 = vmatprep.subr.mxu0 0.0
      %1345 = vmatpush1.msra.mxu0 0.0
      %1346 = vmatprep.subr.mxu0 0.0
      %1347 = vmatpush1.msra.mxu0 0.0
      %1348 = vmatprep.subr.mxu0 0.0
      %v1349 = vand.u32 %v923, 4294901760
      %v1350 = vsub.f32 %v923, %v1349
      %v1351 = vand.u32 %v1350, 4294901760
      %1352 = vmatpush1.msra.mxu0 %v1351
      %1353 = vmatprep.subr.mxu0 0.0
      %1354 = vmatpush2.msra.mxu0 0.0
      %1355 = vmatprep.subr.mxu0 0.0
      %1356 = vmatpush2.msra.mxu0 0.0
      %1357 = vmatprep.subr.mxu0 0.0
      %1358 = vmatpush2.msra.mxu0 0.0
      %1359 = vmatprep.subr.mxu0 0.0
      %1360 = vmatpush2.msra.mxu0 0.0
      %1361 = vmatprep.subr.mxu0 0.0
      %1362 = vmatpush2.msra.mxu0 0.0
      %1363 = vmatprep.subr.mxu0 0.0
      %1364 = vmatpush2.msra.mxu0 0.0
      %1365 = vmatprep.subr.mxu0 0.0
      %1366 = vmatpush2.msra.mxu0 0.0
      %1367 = vmatprep.subr.mxu0 0.0
      %1368 = vmatpush2.msra.mxu0 0.0
      %1369 = vmatprep.subr.mxu0 0.0
      %1370 = vmatpush2.msra.mxu0 0.0
      %1371 = vmatprep.subr.mxu0 0.0
      %1372 = vmatpush2.msra.mxu0 0.0
      %1373 = vmatprep.subr.mxu0 0.0
      %1374 = vmatpush2.msra.mxu0 0.0
      %1375 = vmatprep.subr.mxu0 0.0
      %1376 = vmatpush2.msra.mxu0 0.0
      %1377 = vmatprep.subr.mxu0 0.0
      %1378 = vmatpush2.msra.mxu0 0.0
      %1379 = vmatprep.subr.mxu0 0.0
      %1380 = vmatpush2.msra.mxu0 0.0
      %1381 = vmatprep.subr.mxu0 0.0
      %1382 = vmatpush2.msra.mxu0 0.0
      %1383 = vmatprep.subr.mxu0 0.0
      %1384 = vmatpush2.msra.mxu0 0.0
      %1385 = vmatprep.mubr.f32.mxu0 0.0
      %v1386 = vand.u32 %v910, 4294901760
      %1387 = vmatmul.mubr.f32.gmra.mxu0 %v1386
      %v1388 = vpop.f32.mrf.mxu0
      %v1389 = vadd.f32 %v1291, %v1388
      %v1390 = vpop.f32.mrf.mxu0
      %1391 = vmatprep.mubr.f32.mxu0 0.0
      %v1392 = vand.u32 %v913, 4294901760
      %1393 = vmatmul.mubr.f32.gmra.mxu0 %v1392
      %v1394 = vpop.f32.mrf.mxu0
      %v1395 = vadd.f32 %v1299, %v1394
      %v1396 = vpop.f32.mrf.mxu0
      %1397 = vmatprep.mubr.f32.mxu0 0.0
      %v1398 = vand.u32 %v916, 4294901760
      %1399 = vmatmul.mubr.f32.gmra.mxu0 %v1398
      %v1400 = vpop.f32.mrf.mxu0
      %v1401 = vadd.f32 %v1307, %v1400
      %v1402 = vpop.f32.mrf.mxu0
      %1403 = vmatprep.mubr.f32.mxu0 0.0
      %v1404 = vand.u32 %v919, 4294901760
      %1405 = vmatmul.mubr.f32.gmra.mxu0 %v1404
      %v1406 = vpop.f32.mrf.mxu0
      %v1407 = vadd.f32 %v1315, %v1406
      %v1408 = vpop.f32.mrf.mxu0
      %1409 = vdwg.mxu0
      %1410 = vmatprep.subr.mxu0 0.0
      %1411 = vmatpush1.msra.mxu0 0.0
      %1412 = vmatprep.subr.mxu0 0.0
      %1413 = vmatpush1.msra.mxu0 0.0
      %1414 = vmatprep.subr.mxu0 0.0
      %1415 = vmatpush1.msra.mxu0 0.0
      %1416 = vmatprep.subr.mxu0 0.0
      %1417 = vmatpush1.msra.mxu0 0.0
      %1418 = vmatprep.subr.mxu0 0.0
      %1419 = vmatpush1.msra.mxu0 0.0
      %1420 = vmatprep.subr.mxu0 0.0
      %1421 = vmatpush1.msra.mxu0 0.0
      %1422 = vmatprep.subr.mxu0 0.0
      %1423 = vmatpush1.msra.mxu0 0.0
      %1424 = vmatprep.subr.mxu0 0.0
      %1425 = vmatpush1.msra.mxu0 0.0
      %1426 = vmatprep.subr.mxu0 0.0
      %1427 = vmatpush1.msra.mxu0 0.0
      %1428 = vmatprep.subr.mxu0 0.0
      %1429 = vmatpush1.msra.mxu0 0.0
      %1430 = vmatprep.subr.mxu0 0.0
      %1431 = vmatpush1.msra.mxu0 0.0
      %1432 = vmatprep.subr.mxu0 0.0
      %1433 = vmatpush1.msra.mxu0 0.0
      %1434 = vmatprep.subr.mxu0 0.0
      %1435 = vmatpush1.msra.mxu0 0.0
      %1436 = vmatprep.subr.mxu0 0.0
      %1437 = vmatpush1.msra.mxu0 0.0
      %1438 = vmatprep.subr.mxu0 0.0
      %1439 = vmatpush1.msra.mxu0 0.0
      %1440 = vmatprep.subr.mxu0 0.0
      %v1441 = vand.u32 %v923, 4294901760
      %1442 = vmatpush1.msra.mxu0 %v1441
      %1443 = vmatprep.subr.mxu0 0.0
      %1444 = vmatpush2.msra.mxu0 0.0
      %1445 = vmatprep.subr.mxu0 0.0
      %1446 = vmatpush2.msra.mxu0 0.0
      %1447 = vmatprep.subr.mxu0 0.0
      %1448 = vmatpush2.msra.mxu0 0.0
      %1449 = vmatprep.subr.mxu0 0.0
      %1450 = vmatpush2.msra.mxu0 0.0
      %1451 = vmatprep.subr.mxu0 0.0
      %1452 = vmatpush2.msra.mxu0 0.0
      %1453 = vmatprep.subr.mxu0 0.0
      %1454 = vmatpush2.msra.mxu0 0.0
      %1455 = vmatprep.subr.mxu0 0.0
      %1456 = vmatpush2.msra.mxu0 0.0
      %1457 = vmatprep.subr.mxu0 0.0
      %1458 = vmatpush2.msra.mxu0 0.0
      %1459 = vmatprep.subr.mxu0 0.0
      %1460 = vmatpush2.msra.mxu0 0.0
      %1461 = vmatprep.subr.mxu0 0.0
      %1462 = vmatpush2.msra.mxu0 0.0
      %1463 = vmatprep.subr.mxu0 0.0
      %1464 = vmatpush2.msra.mxu0 0.0
      %1465 = vmatprep.subr.mxu0 0.0
      %1466 = vmatpush2.msra.mxu0 0.0
      %1467 = vmatprep.subr.mxu0 0.0
      %1468 = vmatpush2.msra.mxu0 0.0
      %1469 = vmatprep.subr.mxu0 0.0
      %1470 = vmatpush2.msra.mxu0 0.0
      %1471 = vmatprep.subr.mxu0 0.0
      %1472 = vmatpush2.msra.mxu0 0.0
      %1473 = vmatprep.subr.mxu0 0.0
      %1474 = vmatpush2.msra.mxu0 0.0
      %1475 = vmatprep.mubr.f32.mxu0 0.0
      %v1476 = vand.u32 %v910, 4294901760
      %1477 = vmatmul.mubr.f32.gmra.mxu0 %v1476
      %v1478 = vpop.f32.mrf.mxu0
      %v1479 = vadd.f32 %v1389, %v1478
      %v1480 = vpop.f32.mrf.mxu0
      %1481 = vmatprep.mubr.f32.mxu0 0.0
      %v1482 = vand.u32 %v913, 4294901760
      %1483 = vmatmul.mubr.f32.gmra.mxu0 %v1482
      %v1484 = vpop.f32.mrf.mxu0
      %v1485 = vadd.f32 %v1395, %v1484
      %v1486 = vpop.f32.mrf.mxu0
      %1487 = vmatprep.mubr.f32.mxu0 0.0
      %v1488 = vand.u32 %v916, 4294901760
      %1489 = vmatmul.mubr.f32.gmra.mxu0 %v1488
      %v1490 = vpop.f32.mrf.mxu0
      %v1491 = vadd.f32 %v1401, %v1490
      %v1492 = vpop.f32.mrf.mxu0
      %1493 = vmatprep.mubr.f32.mxu0 0.0
      %v1494 = vand.u32 %v919, 4294901760
      %1495 = vmatmul.mubr.f32.gmra.mxu0 %v1494
      %v1496 = vpop.f32.mrf.mxu0
      %v1497 = vadd.f32 %v1407, %v1496
      %v1498 = vpop.f32.mrf.mxu0
      %1499 = vdwg.mxu0
      %vm1500 = vcmask 130048
      %1501 = vst.msk [vmem:[%s214] sm:$0xff] %vm1500, %v1479
      %1502 = vst.msk [vmem:[%s214 + $0x8] sm:$0xff] %vm1500, %v1485
      %1503 = vst.msk [vmem:[%s214 + $0x10] sm:$0xff] %vm1500, %v1491
      %1504 = vst.msk [vmem:[%s214 + $0x18] sm:$0xff] %vm1500, %v1497
      %s1505 = smul.u32 4, %s19
      %p1506 = scmp.lt.s32.totalorder %s18, 1
      %s1507 = scalar_select %p1506, %s18, 1
      %p1508 = scmp.lt.s32.totalorder %s1505, 3
      %s1509 = scalar_select %p1508, %s1505, 3
      %s1510 = smul.addr %s1507, 4
      %s1511 = sadd.s32 %s1509, %s1510
      %s1512 = smul.addr %s1511, 8
      %s1513 = scalar_lea.vmem %s3, %s1512
      // Predicated region
      $region33: #{tpu_custom_call.1} parent=31 // pred_check
        %p1514 = pneg %p119
      $region34: #{tpu_custom_call.1} parent=31 // pred_check_branch
        %1516 = sbr.rel (%p1514) target = $region36
      $region35: #{tpu_custom_call.1} parent=31 // pred_region
        %s1517 = smul.u32 4, %s19
      $region36: #{tpu_custom_call.1} parent=31 // pred_fallthru
        _
    $region32: #{tpu_custom_call.1} parent=5 // pred_fallthru
      _
    %p1518 = scmp.le.s32.totalorder 2, %s9
    // Predicated region
    $region37: #{tpu_custom_call.1} parent=5 // pred_check
      %p1519 = pneg %p1518
    $region38: #{tpu_custom_call.1} parent=5 // pred_check_branch
      %1521 = sbr.rel (%p1519) target = $region40
    $region39: #{tpu_custom_call.1} parent=5 // pred_region
      %s1522 = ssub.s32 %s9, 2
      // Predicated region
      $region41: #{tpu_custom_call.1} parent=39 // pred_check
        %p1523 = pneg %p125
      $region42: #{tpu_custom_call.1} parent=39 // pred_check_branch
        %1525 = sbr.rel (%p1523) target = $region44
      $region43: #{tpu_custom_call.1} parent=39 // pred_region
        %s1526 = smul.u32 4, %s21
        %p1527 = scmp.lt.s32.totalorder %s20, 1
        %s1528 = scalar_select %p1527, %s20, 1
        %p1529 = scmp.lt.s32.totalorder %s1526, 3
        %s1530 = scalar_select %p1529, %s1526, 3
        %s1531 = smul.addr %s1528, 4
        %s1532 = sadd.s32 %s1530, %s1531
        %s1533 = smul.addr %s1532, 8
        %s1534 = scalar_lea.vmem %s3, %s1533
      $region44: #{tpu_custom_call.1} parent=39 // pred_fallthru
        _
    $region40: #{tpu_custom_call.1} parent=5 // pred_fallthru
      _
  $region6: #{tpu_custom_call.1} parent=0 // loop_footer
    %s13 = sadd.s32 1, %s9
  $region7: #{tpu_custom_call.1} parent=0 // loop_footer_branch
    %8 = sbr.rel target = $region3
  $region8: #{tpu_custom_call.1} parent=0 // loop_exit
    _

</llo_original>
